<compile_context>
chip_gen: v7x
topology: tpu7x:2x2x1
jax: 0.10.0
libtpu: 0.0.40
codegen_flags: <defaults>
</compile_context>

<pallas_src>
import functools

import jax
import jax.numpy as jnp
from jax.experimental import pallas as pl
from jax.experimental.pallas import tpu as pltpu


def _round_up(x, m):
    return ((x + m - 1) // m) * m


# ----------------------------- Pallas kernel -----------------------------
def _gated_conv_fused_kernel(w_ref, b_ref, xlo_ref, xhi_ref, o_ref, *,
                             cout_pad, tile, tap_offsets, activation):
    # w_ref : (ntaps, 2*Cout_pad, Cin)  bf16/f32, constant -> resident in VMEM
    # b_ref : (2*Cout_pad, 1)           f32,      constant -> resident in VMEM
    # xlo   : (Cin, TILE)               flat padded input, window of tile t
    # xhi   : (Cin, T_OV)               flat padded input, start of tile t+1
    # o_ref : (Cout_pad, TILE)          gated output tile (lane-dense)
    xw = jnp.concatenate([xlo_ref[...], xhi_ref[...]], axis=-1)  # (Cin, TILE+T_OV)

    acc = jnp.zeros((2 * cout_pad, tile), jnp.float32)
    for idx, off in enumerate(tap_offsets):          # static unrolled tap loop
        acc += jnp.dot(w_ref[idx], xw[:, off:off + tile],
                       preferred_element_type=jnp.float32)
    acc += b_ref[...]                                # bias in f32

    h = acc[:cout_pad, :]                            # 8-aligned slices
    g = acc[cout_pad:, :]
    if activation is not None:
        h = activation(h)
    o_ref[...] = (h * jax.nn.sigmoid(g)).astype(o_ref.dtype)


def _gated_conv_fused(xflat, w_taps, b2, *, cout_pad, tile, t_ov, n_tiles,
                      tap_offsets, activation):
    # xflat : (N, Cin, L_in)   flattened zero-padded input (compute dtype)
    # w_taps: (ntaps, 2*Cout_pad, Cin), b2: (2*Cout_pad, 1) f32
    N, cin, _ = xflat.shape
    ntaps, co2, _ = w_taps.shape
    l_pad = n_tiles * tile
    hi_stride = tile // t_ov
    in_bytes = xflat.dtype.itemsize

    kernel = functools.partial(
        _gated_conv_fused_kernel, cout_pad=cout_pad, tile=tile,
        tap_offsets=tap_offsets, activation=activation)

    flops = 2 * N * l_pad * ntaps * co2 * cin
    transcendentals = N * l_pad * cout_pad
    bytes_accessed = (N * cin * (l_pad + n_tiles * t_ov) * in_bytes
                      + w_taps.size * in_bytes + b2.size * 4
                      + N * cout_pad * l_pad * 4)

    # actual per-step VMEM footprint (double-buffered inputs/outputs + weights)
    est_vmem = (2 * cin * (tile + t_ov) * in_bytes
                + 2 * cout_pad * tile * 4
                + 2 * (w_taps.size * in_bytes + co2 * 4))
    vmem_limit = int(min(max(2 * est_vmem + (8 << 20), 32 << 20), 100 << 20))

    return pl.pallas_call(
        kernel,
        out_shape=jax.ShapeDtypeStruct((N, cout_pad, l_pad), jnp.float32),
        grid=(N, n_tiles),
        in_specs=[
            # fused per-tap weights / bias: constant index -> DMA'd once
            pl.BlockSpec((ntaps, co2, cin), lambda n, t: (0, 0, 0)),
            pl.BlockSpec((co2, 1), lambda n, t: (0, 0)),
            # overlapping input window: TILE-wide "lo" block of tile t ...
            pl.BlockSpec((None, cin, tile), lambda n, t: (n, 0, t)),
            # ... plus a narrow T_OV-wide "hi" block at the start of tile t+1.
            pl.BlockSpec((None, cin, t_ov),
                         lambda n, t: (n, 0, (t + 1) * hi_stride)),
        ],
        out_specs=pl.BlockSpec((None, cout_pad, tile), lambda n, t: (n, 0, t)),
        compiler_params=pltpu.CompilerParams(
            dimension_semantics=("parallel", "parallel"),
            vmem_limit_bytes=vmem_limit),
        cost_estimate=pl.CostEstimate(
            flops=flops, transcendentals=transcendentals,
            bytes_accessed=bytes_accessed),
    )(w_taps, b2, xflat, xflat)


# ------------------------------- module wrapper ----------------------------
class GatedConv2dPallas:
    """Equivalent of the PyTorch GatedConv2d: h(x) * sigmoid(g(x))."""

    def __init__(self, input_channels, output_channels, kernel_size, stride,
                 padding=0, dilation=1, activation=None, block_hw=512,
                 use_bf16=True, key=jax.random.PRNGKey(0)):
        self.cin = input_channels
        self.cout = output_channels
        self.k = kernel_size
        self.stride = stride
        self.padding = padding
        self.dilation = dilation
        self.activation = activation
        # target spatial tile width (lanes); multiple of 128.  Sweep up to
        # 1024-2048 on v6e (128 MiB VMEM); keep <=512 on v5e/v7x.
        self.block_hw = max(128, _round_up(block_hw, 128))
        self.compute_dtype = jnp.bfloat16 if use_bf16 else jnp.float32

        k1, k2, k3, k4 = jax.random.split(key, 4)
        fan_in = input_channels * kernel_size * kernel_size
        bound = 1.0 / jnp.sqrt(fan_in)
        # PyTorch Conv2d weight layout: (C_out, C_in, kh, kw)
        self.wh = jax.random.uniform(k1, (output_channels, input_channels,
                                          kernel_size, kernel_size),
                                     jnp.float32, -bound, bound)
        self.bh = jax.random.uniform(k2, (output_channels,), jnp.float32,
                                     -bound, bound)
        self.wg = jax.random.uniform(k3, (output_channels, input_channels,
                                          kernel_size, kernel_size),
                                     jnp.float32, -bound, bound)
        self.bg = jax.random.uniform(k4, (output_channels,), jnp.float32,
                                     -bound, bound)

    def __call__(self, x):
        # x: (N, C_in, H, W) NCHW
        N, Cin, H, W = x.shape
        kh = kw = self.k
        s, p, d = self.stride, self.padding, self.dilation

        H_pad, W_pad = H + 2 * p, W + 2 * p
        Ho1 = H_pad - d * (kh - 1)                   # stride-1 output dims
        Wo1 = W_pad - d * (kw - 1)

        # flat padded input; compute dtype (bf16) halves the dominant HBM stream
        xp = jnp.pad(x, ((0, 0), (0, 0), (p, p), (p, p)))
        xflat = xp.reshape(N, Cin, H_pad * W_pad).astype(self.compute_dtype)

        # valid flat range and tap offsets on the flat (y*W_pad + x) grid
        L_valid = (Ho1 - 1) * W_pad + Wo1
        max_off = (kh - 1) * d * W_pad + (kw - 1) * d
        t_ov = _round_up(max(max_off, 1), 128)       # "hi" block width
        # adaptive tile: cdiv-based grid, tile a multiple of t_ov (and of 128)
        n_est = pl.cdiv(L_valid, max(self.block_hw, t_ov))
        tile = _round_up(pl.cdiv(L_valid, n_est), t_ov)
        n_tiles = pl.cdiv(L_valid, tile)
        l_pad = n_tiles * tile
        l_in = (n_tiles + 1) * tile                  # lo + hi blocks all in-bounds
        xflat = jnp.pad(xflat, ((0, 0), (0, 0), (0, l_in - H_pad * W_pad)))

        # fused per-tap weights (ntaps, 2*Cout_pad, Cin) with Cout padded to 8
        cout_pad = _round_up(self.cout, 8)
        co2 = 2 * cout_pad
        ntaps = kh * kw
        wh_t = jnp.transpose(self.wh, (2, 3, 0, 1)).reshape(ntaps, self.cout, Cin)
        wg_t = jnp.transpose(self.wg, (2, 3, 0, 1)).reshape(ntaps, self.cout, Cin)
        w_taps = jnp.zeros((ntaps, co2, Cin), self.compute_dtype)
        w_taps = w_taps.at[:, :self.cout, :].set(wh_t.astype(self.compute_dtype))
        w_taps = w_taps.at[:, cout_pad:cout_pad + self.cout, :].set(
            wg_t.astype(self.compute_dtype))
        b2 = jnp.zeros((co2, 1), jnp.float32)
        b2 = b2.at[:self.cout, 0].set(self.bh)
        b2 = b2.at[cout_pad:cout_pad + self.cout, 0].set(self.bg)

        offs = tuple(int(i * d * W_pad + j * d)
                     for i in range(kh) for j in range(kw))

        out = _gated_conv_fused(
            xflat, w_taps, b2, cout_pad=cout_pad, tile=tile, t_ov=t_ov,
            n_tiles=n_tiles, tap_offsets=offs, activation=self.activation)

        # out: (N, Cout_pad, l_pad) f32 over the flat stride-1 padded grid
        need = Ho1 * W_pad
        if out.shape[-1] >= need:
            out = out[:, :, :need]
        else:
            out = jnp.pad(out, ((0, 0), (0, 0), (0, need - out.shape[-1])))
        out = out.reshape(N, cout_pad, Ho1, W_pad)[:, :self.cout, :, :Wo1]
        if s > 1:
            out = out[:, :, ::s, ::s]                # stride via subsample
        return out


# ----------------------------------- main ----------------------------------
if __name__ == "__main__":
    key = jax.random.PRNGKey(0)
    kx, kp = jax.random.split(key)

    # small shapes: batch=2, C_in=4, 16x16 spatial, C_out=8, 3x3, stride 1, pad 1
    N, Cin, H, W = 2, 4, 16, 16
    Cout, ksize, stride, pad = 8, 3, 1, 1

    x = jax.random.normal(kx, (N, Cin, H, W), jnp.float32)

    mod = GatedConv2dPallas(Cin, Cout, ksize, stride, padding=pad,
                            dilation=1, key=kp)
    y = mod(x)
    jax.block_until_ready(y)

    # Reference: same math with inputs/weights rounded to bf16 (the kernel's
    # MXU operand precision); conv accumulation, bias, sigmoid, gating in f32.
    def rt(a):  # round-trip through bf16, matching the kernel operand precision
        return a.astype(jnp.bfloat16).astype(jnp.float32)

    def ref_conv(xx, w, b):
        out = jax.lax.conv_general_dilated(
            rt(xx), rt(w), window_strides=(stride, stride),
            padding=((pad, pad), (pad, pad)),
            rhs_dilation=(1, 1),
            dimension_numbers=("NCHW", "OIHW", "NCHW"))
        return out + b.reshape(1, -1, 1, 1)

    h_ref = ref_conv(x, mod.wh, mod.bh)
    g_ref = ref_conv(x, mod.wg, mod.bg)
    y_ref = h_ref * jax.nn.sigmoid(g_ref)

    assert y.shape == y_ref.shape, "shape mismatch vs reference"
    max_err = float(jnp.max(jnp.abs(y - y_ref)))
    assert jnp.allclose(y, y_ref, atol=1e-3, rtol=1e-3), (
        "mismatch vs reference, max abs err = %g" % max_err)

    print("KERNEL_OK")
</pallas_src>

<mosaic_0001>
module attributes {stable_mosaic.version = 11 : i64} {
  func.func @_gated_conv_fused_kernel(%arg0: i32, %arg1: i32, %arg2: memref<9x16x4xbf16, #tpu.memory_space<vmem>>, %arg3: memref<16x1xf32, #tpu.memory_space<vmem>>, %arg4: memref<1x4x384xbf16, #tpu.memory_space<vmem>>, %arg5: memref<1x4x128xbf16, #tpu.memory_space<vmem>>, %arg6: memref<1x8x384xf32, #tpu.memory_space<vmem>>) attributes {dimension_semantics = [#tpu.dimension_semantics<parallel>, #tpu.dimension_semantics<parallel>], iteration_bounds = array<i64: 2, 1>, scalar_prefetch = 0 : i64, scratch_operands = 0 : i64, tpu.core_type = #tpu.core_type<tc>, window_params = [{pipeline_mode = #tpu.pipeline_mode<synchronous>, transform_indices = @transform_0, window_bounds = array<i64: 9, 16, 4>}, {pipeline_mode = #tpu.pipeline_mode<synchronous>, transform_indices = @transform_1, window_bounds = array<i64: 16, 1>}, {transform_indices = @transform_2, window_bounds = array<i64: 1, 4, 384>}, {transform_indices = @transform_3, window_bounds = array<i64: 1, 4, 128>}, {transform_indices = @transform_4, window_bounds = array<i64: 1, 8, 384>}]} {
    %c0 = arith.constant 0 : index
    %c0_0 = arith.constant 0 : index
    %c0_1 = arith.constant 0 : index
    %0 = vector.load %arg4[%c0, %c0_0, %c0_1] : memref<1x4x384xbf16, #tpu.memory_space<vmem>>, vector<1x4x384xbf16>
    %1 = vector.shape_cast %0 : vector<1x4x384xbf16> to vector<4x384xbf16>
    %c0_2 = arith.constant 0 : index
    %c0_3 = arith.constant 0 : index
    %c0_4 = arith.constant 0 : index
    %2 = vector.load %arg5[%c0_2, %c0_3, %c0_4] : memref<1x4x128xbf16, #tpu.memory_space<vmem>>, vector<1x4x128xbf16>
    %3 = vector.shape_cast %2 : vector<1x4x128xbf16> to vector<4x128xbf16>
    %4 = tpu.concatenate %1, %3 in 1 : vector<4x384xbf16>, vector<4x128xbf16> -> vector<4x512xbf16>
    %cst = arith.constant 0.000000e+00 : f32
    %5 = vector.broadcast %cst : f32 to vector<16x384xf32>
    %c0_5 = arith.constant 0 : index
    %c0_6 = arith.constant 0 : index
    %c0_7 = arith.constant 0 : index
    %6 = vector.load %arg2[%c0_5, %c0_6, %c0_7] : memref<9x16x4xbf16, #tpu.memory_space<vmem>>, vector<1x16x4xbf16>
    %7 = vector.shape_cast %6 : vector<1x16x4xbf16> to vector<16x4xbf16>
    %8 = vector.extract_strided_slice %4 {offsets = [0, 0], sizes = [4, 384], strides = [1, 1]} : vector<4x512xbf16> to vector<4x384xbf16>
    %cst_8 = arith.constant dense<0.000000e+00> : vector<16x384xf32>
    %9 = tpu.matmul %7, %8, %cst_8 {dimension_numbers = #tpu.dot_dimension_numbers<[1], [0], [0], [1], [0, 0, 1, 1], [], []>} : vector<16x4xbf16>, vector<4x384xbf16>, vector<16x384xf32> -> vector<16x384xf32>
    %10 = arith.addf %5, %9 : vector<16x384xf32>
    %c1 = arith.constant 1 : index
    %c0_9 = arith.constant 0 : index
    %c0_10 = arith.constant 0 : index
    %11 = vector.load %arg2[%c1, %c0_9, %c0_10] : memref<9x16x4xbf16, #tpu.memory_space<vmem>>, vector<1x16x4xbf16>
    %12 = vector.shape_cast %11 : vector<1x16x4xbf16> to vector<16x4xbf16>
    %13 = vector.extract_strided_slice %4 {offsets = [0, 1], sizes = [4, 384], strides = [1, 1]} : vector<4x512xbf16> to vector<4x384xbf16>
    %cst_11 = arith.constant dense<0.000000e+00> : vector<16x384xf32>
    %14 = tpu.matmul %12, %13, %cst_11 {dimension_numbers = #tpu.dot_dimension_numbers<[1], [0], [0], [1], [0, 0, 1, 1], [], []>} : vector<16x4xbf16>, vector<4x384xbf16>, vector<16x384xf32> -> vector<16x384xf32>
    %15 = arith.addf %10, %14 : vector<16x384xf32>
    %c2 = arith.constant 2 : index
    %c0_12 = arith.constant 0 : index
    %c0_13 = arith.constant 0 : index
    %16 = vector.load %arg2[%c2, %c0_12, %c0_13] : memref<9x16x4xbf16, #tpu.memory_space<vmem>>, vector<1x16x4xbf16>
    %17 = vector.shape_cast %16 : vector<1x16x4xbf16> to vector<16x4xbf16>
    %18 = vector.extract_strided_slice %4 {offsets = [0, 2], sizes = [4, 384], strides = [1, 1]} : vector<4x512xbf16> to vector<4x384xbf16>
    %cst_14 = arith.constant dense<0.000000e+00> : vector<16x384xf32>
    %19 = tpu.matmul %17, %18, %cst_14 {dimension_numbers = #tpu.dot_dimension_numbers<[1], [0], [0], [1], [0, 0, 1, 1], [], []>} : vector<16x4xbf16>, vector<4x384xbf16>, vector<16x384xf32> -> vector<16x384xf32>
    %20 = arith.addf %15, %19 : vector<16x384xf32>
    %c3 = arith.constant 3 : index
    %c0_15 = arith.constant 0 : index
    %c0_16 = arith.constant 0 : index
    %21 = vector.load %arg2[%c3, %c0_15, %c0_16] : memref<9x16x4xbf16, #tpu.memory_space<vmem>>, vector<1x16x4xbf16>
    %22 = vector.shape_cast %21 : vector<1x16x4xbf16> to vector<16x4xbf16>
    %23 = vector.extract_strided_slice %4 {offsets = [0, 18], sizes = [4, 384], strides = [1, 1]} : vector<4x512xbf16> to vector<4x384xbf16>
    %cst_17 = arith.constant dense<0.000000e+00> : vector<16x384xf32>
    %24 = tpu.matmul %22, %23, %cst_17 {dimension_numbers = #tpu.dot_dimension_numbers<[1], [0], [0], [1], [0, 0, 1, 1], [], []>} : vector<16x4xbf16>, vector<4x384xbf16>, vector<16x384xf32> -> vector<16x384xf32>
    %25 = arith.addf %20, %24 : vector<16x384xf32>
    %c4 = arith.constant 4 : index
    %c0_18 = arith.constant 0 : index
    %c0_19 = arith.constant 0 : index
    %26 = vector.load %arg2[%c4, %c0_18, %c0_19] : memref<9x16x4xbf16, #tpu.memory_space<vmem>>, vector<1x16x4xbf16>
    %27 = vector.shape_cast %26 : vector<1x16x4xbf16> to vector<16x4xbf16>
    %28 = vector.extract_strided_slice %4 {offsets = [0, 19], sizes = [4, 384], strides = [1, 1]} : vector<4x512xbf16> to vector<4x384xbf16>
    %cst_20 = arith.constant dense<0.000000e+00> : vector<16x384xf32>
    %29 = tpu.matmul %27, %28, %cst_20 {dimension_numbers = #tpu.dot_dimension_numbers<[1], [0], [0], [1], [0, 0, 1, 1], [], []>} : vector<16x4xbf16>, vector<4x384xbf16>, vector<16x384xf32> -> vector<16x384xf32>
    %30 = arith.addf %25, %29 : vector<16x384xf32>
    %c5 = arith.constant 5 : index
    %c0_21 = arith.constant 0 : index
    %c0_22 = arith.constant 0 : index
    %31 = vector.load %arg2[%c5, %c0_21, %c0_22] : memref<9x16x4xbf16, #tpu.memory_space<vmem>>, vector<1x16x4xbf16>
    %32 = vector.shape_cast %31 : vector<1x16x4xbf16> to vector<16x4xbf16>
    %33 = vector.extract_strided_slice %4 {offsets = [0, 20], sizes = [4, 384], strides = [1, 1]} : vector<4x512xbf16> to vector<4x384xbf16>
    %cst_23 = arith.constant dense<0.000000e+00> : vector<16x384xf32>
    %34 = tpu.matmul %32, %33, %cst_23 {dimension_numbers = #tpu.dot_dimension_numbers<[1], [0], [0], [1], [0, 0, 1, 1], [], []>} : vector<16x4xbf16>, vector<4x384xbf16>, vector<16x384xf32> -> vector<16x384xf32>
    %35 = arith.addf %30, %34 : vector<16x384xf32>
    %c6 = arith.constant 6 : index
    %c0_24 = arith.constant 0 : index
    %c0_25 = arith.constant 0 : index
    %36 = vector.load %arg2[%c6, %c0_24, %c0_25] : memref<9x16x4xbf16, #tpu.memory_space<vmem>>, vector<1x16x4xbf16>
    %37 = vector.shape_cast %36 : vector<1x16x4xbf16> to vector<16x4xbf16>
    %38 = vector.extract_strided_slice %4 {offsets = [0, 36], sizes = [4, 384], strides = [1, 1]} : vector<4x512xbf16> to vector<4x384xbf16>
    %cst_26 = arith.constant dense<0.000000e+00> : vector<16x384xf32>
    %39 = tpu.matmul %37, %38, %cst_26 {dimension_numbers = #tpu.dot_dimension_numbers<[1], [0], [0], [1], [0, 0, 1, 1], [], []>} : vector<16x4xbf16>, vector<4x384xbf16>, vector<16x384xf32> -> vector<16x384xf32>
    %40 = arith.addf %35, %39 : vector<16x384xf32>
    %c7 = arith.constant 7 : index
    %c0_27 = arith.constant 0 : index
    %c0_28 = arith.constant 0 : index
    %41 = vector.load %arg2[%c7, %c0_27, %c0_28] : memref<9x16x4xbf16, #tpu.memory_space<vmem>>, vector<1x16x4xbf16>
    %42 = vector.shape_cast %41 : vector<1x16x4xbf16> to vector<16x4xbf16>
    %43 = vector.extract_strided_slice %4 {offsets = [0, 37], sizes = [4, 384], strides = [1, 1]} : vector<4x512xbf16> to vector<4x384xbf16>
    %cst_29 = arith.constant dense<0.000000e+00> : vector<16x384xf32>
    %44 = tpu.matmul %42, %43, %cst_29 {dimension_numbers = #tpu.dot_dimension_numbers<[1], [0], [0], [1], [0, 0, 1, 1], [], []>} : vector<16x4xbf16>, vector<4x384xbf16>, vector<16x384xf32> -> vector<16x384xf32>
    %45 = arith.addf %40, %44 : vector<16x384xf32>
    %c8 = arith.constant 8 : index
    %c0_30 = arith.constant 0 : index
    %c0_31 = arith.constant 0 : index
    %46 = vector.load %arg2[%c8, %c0_30, %c0_31] : memref<9x16x4xbf16, #tpu.memory_space<vmem>>, vector<1x16x4xbf16>
    %47 = vector.shape_cast %46 : vector<1x16x4xbf16> to vector<16x4xbf16>
    %48 = vector.extract_strided_slice %4 {offsets = [0, 38], sizes = [4, 384], strides = [1, 1]} : vector<4x512xbf16> to vector<4x384xbf16>
    %cst_32 = arith.constant dense<0.000000e+00> : vector<16x384xf32>
    %49 = tpu.matmul %47, %48, %cst_32 {dimension_numbers = #tpu.dot_dimension_numbers<[1], [0], [0], [1], [0, 0, 1, 1], [], []>} : vector<16x4xbf16>, vector<4x384xbf16>, vector<16x384xf32> -> vector<16x384xf32>
    %50 = arith.addf %45, %49 : vector<16x384xf32>
    %c0_33 = arith.constant 0 : index
    %c0_34 = arith.constant 0 : index
    %51 = vector.load %arg3[%c0_33, %c0_34] : memref<16x1xf32, #tpu.memory_space<vmem>>, vector<16x1xf32>
    %52 = vector.broadcast %51 : vector<16x1xf32> to vector<16x384xf32>
    %53 = arith.addf %50, %52 : vector<16x384xf32>
    %54 = vector.extract_strided_slice %53 {offsets = [0, 0], sizes = [8, 384], strides = [1, 1]} : vector<16x384xf32> to vector<8x384xf32>
    %55 = vector.extract_strided_slice %53 {offsets = [8, 0], sizes = [8, 384], strides = [1, 1]} : vector<16x384xf32> to vector<8x384xf32>
    %56 = arith.negf %55 : vector<8x384xf32>
    %57 = math.exp %56 : vector<8x384xf32>
    %cst_35 = arith.constant 1.000000e+00 : f32
    %58 = vector.broadcast %cst_35 : f32 to vector<8x384xf32>
    %59 = arith.addf %58, %57 : vector<8x384xf32>
    %60 = arith.divf %58, %59 : vector<8x384xf32>
    %61 = arith.mulf %54, %60 : vector<8x384xf32>
    %c0_36 = arith.constant 0 : index
    %c0_37 = arith.constant 0 : index
    %c0_38 = arith.constant 0 : index
    %62 = vector.load %arg6[%c0_36, %c0_37, %c0_38] : memref<1x8x384xf32, #tpu.memory_space<vmem>>, vector<1x8x384xf32>
    %63 = vector.shape_cast %62 : vector<1x8x384xf32> to vector<8x384xf32>
    %64 = vector.shape_cast %61 : vector<8x384xf32> to vector<1x8x384xf32>
    tpu.vector_store %arg6[%c0_36, %c0_37, %c0_38], %64 {strides = array<i32>} : memref<1x8x384xf32, #tpu.memory_space<vmem>>, vector<1x8x384xf32>,
    return
  }
  func.func @transform_0(%arg0: i32, %arg1: i32) -> (i32, i32, i32) {
    %c0_i32 = arith.constant 0 : i32
    %c0_i32_0 = arith.constant 0 : i32
    %c0_i32_1 = arith.constant 0 : i32
    %c0_i32_2 = arith.constant 0 : i32
    return %c0_i32, %c0_i32_0, %c0_i32_1 : i32, i32, i32
  }
  func.func @transform_1(%arg0: i32, %arg1: i32) -> (i32, i32) {
    %c0_i32 = arith.constant 0 : i32
    %c0_i32_0 = arith.constant 0 : i32
    %c0_i32_1 = arith.constant 0 : i32
    return %c0_i32, %c0_i32_0 : i32, i32
  }
  func.func @transform_2(%arg0: i32, %arg1: i32) -> (i32, i32, i32) {
    %c0_i32 = arith.constant 0 : i32
    %c0_i32_0 = arith.constant 0 : i32
    return %arg0, %c0_i32, %arg1 : i32, i32, i32
  }
  func.func @transform_3(%arg0: i32, %arg1: i32) -> (i32, i32, i32) {
    %c1_i32 = arith.constant 1 : i32
    %0 = arith.addi %arg1, %c1_i32 : i32
    %c3_i32 = arith.constant 3 : i32
    %1 = arith.muli %0, %c3_i32 : i32
    %c0_i32 = arith.constant 0 : i32
    %c0_i32_0 = arith.constant 0 : i32
    return %arg0, %c0_i32, %1 : i32, i32, i32
  }
  func.func @transform_4(%arg0: i32, %arg1: i32) -> (i32, i32, i32) {
    %c0_i32 = arith.constant 0 : i32
    %c0_i32_0 = arith.constant 0 : i32
    return %arg0, %c0_i32, %arg1 : i32, i32, i32
  }
}

</mosaic_0001>

<llo_original>
// kernel: tpu_custom_call.1
$region0: #{tpu_custom_call.1}
  #allocation0 [shape = 'u32[]', space=smem, size = 0x4, offset = 0x4, fixed_abs, tag = 'smem constant byte address 0x4 - core index']
  #allocation1 [shape = 'u32[144,128]{1,0:T(1,128)}', space=vmem, size = 0x12000, scoped, tag = 'internal scratch']
  %s0 = inlined_call_operand.vmem [shape: bf16[9,16,4], index: 0, kind: input, shape index: {}]
  %s1 = inlined_call_operand.vmem [shape: f32[16,1], index: 1, kind: input, shape index: {}]
  %s2 = inlined_call_operand.vmem [shape: bf16[2,4,768], index: 2, kind: input, shape index: {}]
  %s3 = inlined_call_operand.vmem [shape: bf16[2,4,768], index: 3, kind: input, shape index: {}]
  %s4 = inlined_call_operand.hbm [shape: f32[2,8,384], index: 4, kind: output, shape index: {}]
  %s5 = sld [smem:[#allocation0]]
  $region49: #{tpu_custom_call.1} parent=0
    _
  %s7 = ssub.s32 1, %s5
  %s8 = scalar_select 0, %s7, %s5
  $region1: #{tpu_custom_call.1} parent=0
    #allocation2 [shape = 'u8[24576]{0}', space=vmem, size = 0x6000, scoped, tag = 'output window, operand 0']
    #allocation3 [shape = 's32[2]{0}', space=sflag, size = 0x8, scoped, tag = 'scoped memory for tpu_custom_call.1']
    %9 = vsyncpa [#allocation3], 0
    %s10 = scalar_lea.sflag [#allocation3], 1
    %11 = vsyncpa %s10, 0
    loop: start=0, step=1, limit=4
    $region2: #{tpu_custom_call.1} parent=1 // loop_pre_header
      _
    $region3: #{tpu_custom_call.1} parent=1 // loop_header
      %s13 = sphi 0, %s17
      %p14 = scmp.ge.s32.totalorder %s13, 4
      %s20 = sphi 0, %s32
      %s21 = sphi 0, %s28
      %s22 = sphi 0, %s20
      %s23 = sphi 0, %s21
      %s24 = sphi 0, %s22
      %s25 = sphi 0, %s23
      %s33 = sphi 0, %s33
      %s35 = sphi 0, %s33
      %s36 = sphi 0, %s35
      %s50 = sphi 0, %s36
      %s54 = sphi 0, %s54
      %s56 = sphi 0, %s54
      %s57 = sphi 0, %s56
      %s71 = sphi 0, %s57
      %s79 = sphi 0, %s81
      %s82 = sphi 0, %s79
      %s83 = sphi 0, %s82
      %s99 = sphi 0, %s83
      %s111 = sphi 0, %s113
      %s114 = sphi 0, %s111
      %s115 = sphi 0, %s114
      %s131 = sphi 0, %s115
      %s139 = sphi 0, %s141
      %s142 = sphi 0, %s139
      %s143 = sphi 0, %s142
      %s159 = sphi 0, %s143
    $region4: #{tpu_custom_call.1} parent=1 // loop_header_branch
      %16 = sbr.rel (%p14) target = $region8
    $region5: #{tpu_custom_call.1} parent=1 // loop_body
      %s18 = ssub.s32 %s13, 1
      %s19 = ssub.s32 %s13, 2
      %s26 = sadd.s32 1, %s21
      %p27 = scmp.ge.s32.totalorder %s26, 1
      %s28 = scalar_select %p27, 0, %s26
      %s29 = sadd.s32 1, %s20
      %s30 = scalar_select %p27, %s29, %s20
      %p31 = scmp.ge.s32.totalorder %s30, 2
      %s32 = scalar_select %p31, 0, %s30
      %s34 = sadd.s32 %s33, 1
      %p37 = scmp.eq.s32.totalorder %s13, 1
      %p38 = scmp.ne.s32.totalorder %s33, %s35
      %p39 = scmp.eq.s32.totalorder %s13, 0
      %p40 = por %p38, %p39
      %p41 = scmp.ne.s32.totalorder %s33, %s35
      %p42 = scmp.eq.s32.totalorder %s18, 1
      %p43 = por %p41, %p42
      %p44 = scmp.ne.s32.totalorder %s35, %s36
      %p45 = scmp.eq.s32.totalorder %s18, 0
      %p46 = por %p44, %p45
      %p47 = scmp.ne.s32.totalorder %s35, %s36
      %p48 = scmp.eq.s32.totalorder %s19, 1
      %p49 = por %p47, %p48
      %p51 = scmp.ne.s32.totalorder %s36, %s50
      %p52 = scmp.eq.s32.totalorder %s19, 0
      %p53 = por %p51, %p52
      %s55 = sadd.s32 %s54, 1
      %p58 = scmp.eq.s32.totalorder %s13, 1
      %p59 = scmp.ne.s32.totalorder %s54, %s56
      %p60 = scmp.eq.s32.totalorder %s13, 0
      %p61 = por %p59, %p60
      %p62 = scmp.ne.s32.totalorder %s54, %s56
      %p63 = scmp.eq.s32.totalorder %s18, 1
      %p64 = por %p62, %p63
      %p65 = scmp.ne.s32.totalorder %s56, %s57
      %p66 = scmp.eq.s32.totalorder %s18, 0
      %p67 = por %p65, %p66
      %p68 = scmp.ne.s32.totalorder %s56, %s57
      %p69 = scmp.eq.s32.totalorder %s19, 1
      %p70 = por %p68, %p69
      %p72 = scmp.ne.s32.totalorder %s57, %s71
      %p73 = scmp.eq.s32.totalorder %s19, 0
      %p74 = por %p72, %p73
      %s75 = ssub.s32 %s20, %s32
      %s76 = ssub.s32 %s21, %s28
      %s77 = sor.u32 %s75, %s76
      %p78 = scmp.eq.s32.totalorder %s77, 0
      %s80 = sadd.s32 %s79, 1
      %s81 = scalar_select %p78, %s79, %s80
      %p84 = pneg %p78
      %p85 = scmp.eq.s32.totalorder %s13, 1
      %p86 = por %p84, %p85
      %p87 = scmp.ne.s32.totalorder %s79, %s82
      %p88 = scmp.eq.s32.totalorder %s13, 0
      %p89 = por %p87, %p88
      %p90 = scmp.ne.s32.totalorder %s79, %s82
      %p91 = scmp.eq.s32.totalorder %s18, 1
      %p92 = por %p90, %p91
      %p93 = scmp.ne.s32.totalorder %s82, %s83
      %p94 = scmp.eq.s32.totalorder %s18, 0
      %p95 = por %p93, %p94
      %p96 = scmp.ne.s32.totalorder %s82, %s83
      %p97 = scmp.eq.s32.totalorder %s19, 1
      %p98 = por %p96, %p97
      %p100 = scmp.ne.s32.totalorder %s83, %s99
      %p101 = scmp.eq.s32.totalorder %s19, 0
      %p102 = por %p100, %p101
      %s103 = sadd.s32 %s21, 1
      %s104 = smul.u32 %s103, 3
      %s105 = sadd.s32 %s28, 1
      %s106 = smul.u32 %s105, 3
      %s107 = ssub.s32 %s20, %s32
      %s108 = ssub.s32 %s104, %s106
      %s109 = sor.u32 %s107, %s108
      %p110 = scmp.eq.s32.totalorder %s109, 0
      %s112 = sadd.s32 %s111, 1
      %s113 = scalar_select %p110, %s111, %s112
      %p116 = pneg %p110
      %p117 = scmp.eq.s32.totalorder %s13, 1
      %p118 = por %p116, %p117
      %p119 = scmp.ne.s32.totalorder %s111, %s114
      %p120 = scmp.eq.s32.totalorder %s13, 0
      %p121 = por %p119, %p120
      %p122 = scmp.ne.s32.totalorder %s111, %s114
      %p123 = scmp.eq.s32.totalorder %s18, 1
      %p124 = por %p122, %p123
      %p125 = scmp.ne.s32.totalorder %s114, %s115
      %p126 = scmp.eq.s32.totalorder %s18, 0
      %p127 = por %p125, %p126
      %p128 = scmp.ne.s32.totalorder %s114, %s115
      %p129 = scmp.eq.s32.totalorder %s19, 1
      %p130 = por %p128, %p129
      %p132 = scmp.ne.s32.totalorder %s115, %s131
      %p133 = scmp.eq.s32.totalorder %s19, 0
      %p134 = por %p132, %p133
      %s135 = ssub.s32 %s20, %s32
      %s136 = ssub.s32 %s21, %s28
      %s137 = sor.u32 %s135, %s136
      %p138 = scmp.eq.s32.totalorder %s137, 0
      %s140 = sadd.s32 %s139, 1
      %s141 = scalar_select %p138, %s139, %s140
      %p144 = pneg %p138
      %p145 = scmp.eq.s32.totalorder %s13, 1
      %p146 = por %p144, %p145
      %p147 = scmp.ne.s32.totalorder %s139, %s142
      %p148 = scmp.eq.s32.totalorder %s13, 0
      %p149 = por %p147, %p148
      %p150 = scmp.ne.s32.totalorder %s139, %s142
      %p151 = scmp.eq.s32.totalorder %s18, 1
      %p152 = por %p150, %p151
      %p153 = scmp.ne.s32.totalorder %s142, %s143
      %p154 = scmp.eq.s32.totalorder %s18, 0
      %p155 = por %p153, %p154
      %p156 = scmp.ne.s32.totalorder %s142, %s143
      %p157 = scmp.eq.s32.totalorder %s19, 1
      %p158 = por %p156, %p157
      %p160 = scmp.ne.s32.totalorder %s143, %s159
      %p161 = scmp.eq.s32.totalorder %s19, 0
      %p162 = por %p160, %p161
      %p163 = scmp.le.s32.totalorder 1, %s13
      %p164 = scmp.lt.s32.totalorder %s13, 3
      %p165 = pnand %p163, %p164
      %p166 = pneg %p165
      // Predicated region
      $region9: #{tpu_custom_call.1} parent=5 // pred_check
        _
      $region10: #{tpu_custom_call.1} parent=5 // pred_check_branch
        %168 = sbr.rel (%p165) target = $region12
      $region11: #{tpu_custom_call.1} parent=5 // pred_region
        %s169 = ssub.s32 %s13, 1
        // Predicated region
        $region13: #{tpu_custom_call.1} parent=11 // pred_check
          %p170 = pneg %p46
        $region14: #{tpu_custom_call.1} parent=11 // pred_check_branch
          %172 = sbr.rel (%p170) target = $region16
        $region15: #{tpu_custom_call.1} parent=11 // pred_region
          _
        $region16: #{tpu_custom_call.1} parent=11 // pred_fallthru
          _
        // Predicated region
        $region17: #{tpu_custom_call.1} parent=11 // pred_check
          %p173 = pneg %p67
        $region18: #{tpu_custom_call.1} parent=11 // pred_check_branch
          %175 = sbr.rel (%p173) target = $region20
        $region19: #{tpu_custom_call.1} parent=11 // pred_region
          _
        $region20: #{tpu_custom_call.1} parent=11 // pred_fallthru
          _
      $region12: #{tpu_custom_call.1} parent=5 // pred_fallthru
        _
      %p176 = scmp.lt.s32.totalorder %s13, 2
      // Predicated region
      $region21: #{tpu_custom_call.1} parent=5 // pred_check
        %p177 = pneg %p176
      $region22: #{tpu_custom_call.1} parent=5 // pred_check_branch
        %179 = sbr.rel (%p177) target = $region24
      $region23: #{tpu_custom_call.1} parent=5 // pred_region
        // Predicated region
        $region25: #{tpu_custom_call.1} parent=23 // pred_check
          %p180 = pneg %p89
        $region26: #{tpu_custom_call.1} parent=23 // pred_check_branch
          %182 = sbr.rel (%p180) target = $region28
        $region27: #{tpu_custom_call.1} parent=23 // pred_region
          %s183 = smul.u32 3, %s21
          %p184 = scmp.lt.s32.totalorder %s20, 1
          %s185 = scalar_select %p184, %s20, 1
          %p186 = scmp.lt.s32.totalorder %s183, 5
          %s187 = scalar_select %p186, %s183, 5
          %s188 = smul.addr %s185, 6
          %s189 = sadd.s32 %s187, %s188
          %s190 = smul.addr %s189, 2
          %s191 = scalar_lea.vmem %s2, %s190
          %s192 = smul.u32 3, %s21
        $region28: #{tpu_custom_call.1} parent=23 // pred_fallthru
          _
        // Predicated region
        $region29: #{tpu_custom_call.1} parent=23 // pred_check
          %p193 = pneg %p121
        $region30: #{tpu_custom_call.1} parent=23 // pred_check_branch
          %195 = sbr.rel (%p193) target = $region32
        $region31: #{tpu_custom_call.1} parent=23 // pred_region
          %s196 = sadd.s32 %s21, 1
          %s197 = smul.u32 %s196, 3
          %p198 = scmp.lt.s32.totalorder %s20, 1
          %s199 = scalar_select %p198, %s20, 1
          %p200 = scmp.lt.s32.totalorder %s197, 5
          %s201 = scalar_select %p200, %s197, 5
          %s202 = smul.addr %s199, 6
          %s203 = sadd.s32 %s201, %s202
          %s204 = smul.addr %s203, 2
          %s205 = scalar_lea.vmem %s3, %s204
          %s206 = sadd.s32 %s21, 1
          %s207 = smul.u32 %s206, 3
        $region32: #{tpu_custom_call.1} parent=23 // pred_fallthru
          _
      $region24: #{tpu_custom_call.1} parent=5 // pred_fallthru
        _
      %p208 = scmp.le.s32.totalorder 1, %s13
      %p209 = scmp.lt.s32.totalorder %s13, 3
      %p210 = pnand %p208, %p209
      %p211 = pneg %p210
      // Predicated region
      $region33: #{tpu_custom_call.1} parent=5 // pred_check
        _
      $region34: #{tpu_custom_call.1} parent=5 // pred_check_branch
        %213 = sbr.rel (%p210) target = $region36
      $region35: #{tpu_custom_call.1} parent=5 // pred_region
        %s214 = ssub.s32 %s13, 1
        %p215 = pneg %p46
        %p216 = pneg %p43
        %p217 = pneg %p67
        %p218 = pneg %p64
        %s219 = smul.u32 3, %s23
        %p220 = scmp.lt.s32.totalorder %s22, 1
        %s221 = scalar_select %p220, %s22, 1
        %p222 = scmp.lt.s32.totalorder %s219, 5
        %s223 = scalar_select %p222, %s219, 5
        %s224 = smul.addr %s221, 6
        %s225 = sadd.s32 %s223, %s224
        %s226 = smul.addr %s225, 2
        %s227 = scalar_lea.vmem %s2, %s226
        %p228 = pneg %p95
        %p229 = pneg %p92
        %s230 = sadd.s32 %s23, 1
        %s231 = smul.u32 %s230, 3
        %p232 = scmp.lt.s32.totalorder %s22, 1
        %s233 = scalar_select %p232, %s22, 1
        %p234 = scmp.lt.s32.totalorder %s231, 5
        %s235 = scalar_select %p234, %s231, 5
        %s236 = smul.addr %s233, 6
        %s237 = sadd.s32 %s235, %s236
        %s238 = smul.addr %s237, 2
        %s239 = scalar_lea.vmem %s3, %s238
        %p240 = pneg %p127
        %p241 = pneg %p124
        %p242 = pneg %p155
        %p243 = pneg %p152
        %s244 = sand.u32 %s142, 1
        %s245 = scalar_lea.sflag [#allocation3], %s244
        %s246 = sand.u32 %s142, 1
        %s247 = smul.addr %s246, 24
        %s248 = scalar_lea.vmem [#allocation2], %s247
        %s249 = smul.u32 3, %s23
        %p250 = scmp.lt.s32.totalorder %s22, 1
        %s251 = scalar_select %p250, %s22, 1
        %p252 = scmp.lt.s32.totalorder %s249, 5
        %s253 = scalar_select %p252, %s249, 5
        %s254 = smul.addr %s251, 6
        %s255 = sadd.s32 %s253, %s254
        %s256 = smul.addr %s255, 2
        %s257 = scalar_lea.vmem %s2, %s256
        %s258 = smul.u32 3, %s23
        %s259 = sadd.s32 %s23, 1
        %s260 = smul.u32 %s259, 3
        %p261 = scmp.lt.s32.totalorder %s22, 1
        %s262 = scalar_select %p261, %s22, 1
        %p263 = scmp.lt.s32.totalorder %s260, 5
        %s264 = scalar_select %p263, %s260, 5
        %s265 = smul.addr %s262, 6
        %s266 = sadd.s32 %s264, %s265
        %s267 = smul.addr %s266, 2
        %s268 = scalar_lea.vmem %s3, %s267
        %s269 = sadd.s32 %s23, 1
        %s270 = smul.u32 %s269, 3
        %s271 = smul.u32 3, %s23
        %v273 = vld [vmem:[%s257] sm:$0x3f]
        %v274 = vld [vmem:[%s268] sm:$0x3]
        %v276 = vcombine.high %v273, %v273
        %v278 = vunpack.c.l.s4 1983009808
        %v279 = vunpack.c.0.s8 %v278
        %v280 = vlaneseq
        %v281 = vshrl.u32 %v280, 7
        %v282 = vsub.s32 %v279, %v281
        %v283 = vrot.slane %v273, %v282
        %v285 = vunpack.c.l.s4 1983009808
        %v286 = vunpack.c.0.s8 %v285
        %v287 = vlaneseq
        %v288 = vshrl.u32 %v287, 7
        %v289 = vsub.s32 %v286, %v288
        %v290 = vrot.slane %v276, %v289
        %v291 = vcombine.high %v283, %v283
        %v292 = vld [vmem:[%s0] sm:$0xf]
        %v293 = vld [vmem:[%s0 + $0x4] sm:$0xf]
        %s294 = scalar_lea.vmem %s0, 8
        %v295 = vld [vmem:[%s294] sm:$0xf]
        %v296 = vld [vmem:[%s294 + $0x4] sm:$0xf]
        %v299 = vunpack.c.l.b16 %v295
        %v300 = vunpack.c.l.b16 %v296
        %v301 = vpack.c.b16 %v300, %v299
        %303 = vrot.lane.b32.xlu0 %v283, 127
        %v304 = vpop.permute.xlu0 %303
        %305 = vrot.lane.b32.xlu0 %v291, 127
        %v306 = vpop.permute.xlu0 %305
        %307 = vrot.lane.b32.xlu0 %v290, 127
        %v308 = vpop.permute.xlu0 %307
        %309 = vrot.lane.b32.xlu0 %v274, 127
        %v310 = vpop.permute.xlu0 %309
        %vm311 = vcmask 1039360
        %v312 = vsel %vm311, %v304, %v306
        %v313 = vsel %vm311, %v306, %v308
        %v314 = vsel %vm311, %v308, %v310
        %vm315 = vcmask 31744
        %v317 = vsel %vm315, %v301, 0
        %vm319 = vcmask 1041408
        %v321 = vsel %vm319, %v312, 0
        %v324 = vsel %vm319, %v313, 0
        %v327 = vsel %vm319, %v314, 0
        %329 = vmatprep.subr.bf16.mxu0 %v324
        %330 = vmatpush1.bf16.msra.mxu0 %v321
        %331 = vmatprep.subr.bf16.mxu0 0
        %332 = vmatpush1.bf16.msra.mxu0 0
        %333 = vmatprep.subr.bf16.mxu0 0
        %334 = vmatpush1.bf16.msra.mxu0 0
        %335 = vmatprep.subr.bf16.mxu0 0
        %336 = vmatpush1.bf16.msra.mxu0 0
        %337 = vmatprep.subr.bf16.mxu0 0
        %338 = vmatpush1.bf16.msra.mxu0 0
        %339 = vmatprep.subr.bf16.mxu0 0
        %340 = vmatpush1.bf16.msra.mxu0 0
        %341 = vmatprep.subr.bf16.mxu0 0
        %342 = vmatpush1.bf16.msra.mxu0 0
        %343 = vmatprep.subr.bf16.mxu0 0
        %344 = vmatpush1.bf16.msra.mxu0 0
        %345 = vmatprep.subr.bf16.mxu0 0
        %346 = vmatpush1.bf16.msra.mxu0 0
        %347 = vmatprep.subr.bf16.mxu0 0
        %348 = vmatpush1.bf16.msra.mxu0 0
        %349 = vmatprep.subr.bf16.mxu0 0
        %350 = vmatpush1.bf16.msra.mxu0 0
        %351 = vmatprep.subr.bf16.mxu0 0
        %352 = vmatpush1.bf16.msra.mxu0 0
        %353 = vmatprep.subr.bf16.mxu0 0
        %354 = vmatpush1.bf16.msra.mxu0 0
        %355 = vmatprep.subr.bf16.mxu0 0
        %356 = vmatpush1.bf16.msra.mxu0 0
        %357 = vmatprep.subr.bf16.mxu0 0
        %358 = vmatpush1.bf16.msra.mxu0 0
        %359 = vmatprep.subr.bf16.mxu0 0
        %360 = vmatpush1.bf16.msra.mxu0 0
        %361 = vmatprep.mubr.bf16.mxu0 0
        %362 = vmatmul.mubr.bf16.gmra.mrb[0].mxu0 %v317
        %v363 = vpop.f32.mrb[0].mxu0
        %v364 = vadd.f32 0.0, %v363
        %v365 = vpop.f32.mrb[0].mxu0
        %v366 = vadd.f32 0.0, %v365
        %v367 = vpop.f32.mrb[0].mxu0
        %v368 = vadd.f32 0.0, %v367
        %v369 = vpop.f32.mrb[0].mxu0
        %v370 = vadd.f32 0.0, %v369
        %371 = vdwg.mxu0
        %372 = vmatprep.subr.bf16.mxu0 0
        %373 = vmatpush1.bf16.msra.mxu0 %v327
        %374 = vmatprep.subr.bf16.mxu0 0
        %375 = vmatpush1.bf16.msra.mxu0 0
        %376 = vmatprep.subr.bf16.mxu0 0
        %377 = vmatpush1.bf16.msra.mxu0 0
        %378 = vmatprep.subr.bf16.mxu0 0
        %379 = vmatpush1.bf16.msra.mxu0 0
        %380 = vmatprep.subr.bf16.mxu0 0
        %381 = vmatpush1.bf16.msra.mxu0 0
        %382 = vmatprep.subr.bf16.mxu0 0
        %383 = vmatpush1.bf16.msra.mxu0 0
        %384 = vmatprep.subr.bf16.mxu0 0
        %385 = vmatpush1.bf16.msra.mxu0 0
        %386 = vmatprep.subr.bf16.mxu0 0
        %387 = vmatpush1.bf16.msra.mxu0 0
        %388 = vmatprep.subr.bf16.mxu0 0
        %389 = vmatpush1.bf16.msra.mxu0 0
        %390 = vmatprep.subr.bf16.mxu0 0
        %391 = vmatpush1.bf16.msra.mxu0 0
        %392 = vmatprep.subr.bf16.mxu0 0
        %393 = vmatpush1.bf16.msra.mxu0 0
        %394 = vmatprep.subr.bf16.mxu0 0
        %395 = vmatpush1.bf16.msra.mxu0 0
        %396 = vmatprep.subr.bf16.mxu0 0
        %397 = vmatpush1.bf16.msra.mxu0 0
        %398 = vmatprep.subr.bf16.mxu0 0
        %399 = vmatpush1.bf16.msra.mxu0 0
        %400 = vmatprep.subr.bf16.mxu0 0
        %401 = vmatpush1.bf16.msra.mxu0 0
        %402 = vmatprep.subr.bf16.mxu0 0
        %403 = vmatpush1.bf16.msra.mxu0 0
        %404 = vmatprep.mubr.bf16.mxu0 0
        %405 = vmatmul.mubr.bf16.gmra.mrb[0].mxu0 %v317
        %v406 = vpop.f32.mrb[0].mxu0
        %v407 = vadd.f32 0.0, %v406
        %v408 = vpop.f32.mrb[0].mxu0
        %v409 = vpop.f32.mrb[0].mxu0
        %v410 = vadd.f32 0.0, %v409
        %v411 = vpop.f32.mrb[0].mxu0
        %412 = vdwg.mxu0
        %v415 = vunpack.c.l.b16 %v292
        %v416 = vunpack.c.l.b16 %v293
        %v417 = vpack.c.b16 %v416, %v415
        %v419 = vsel %vm315, %v417, 0
        %v422 = vsel %vm319, %v283, 0
        %v425 = vsel %vm319, %v291, 0
        %v428 = vsel %vm319, %v290, 0
        %430 = vmatprep.subr.bf16.mxu0 %v425
        %431 = vmatpush1.bf16.msra.mxu0 %v422
        %432 = vmatprep.subr.bf16.mxu0 0
        %433 = vmatpush1.bf16.msra.mxu0 0
        %434 = vmatprep.subr.bf16.mxu0 0
        %435 = vmatpush1.bf16.msra.mxu0 0
        %436 = vmatprep.subr.bf16.mxu0 0
        %437 = vmatpush1.bf16.msra.mxu0 0
        %438 = vmatprep.subr.bf16.mxu0 0
        %439 = vmatpush1.bf16.msra.mxu0 0
        %440 = vmatprep.subr.bf16.mxu0 0
        %441 = vmatpush1.bf16.msra.mxu0 0
        %442 = vmatprep.subr.bf16.mxu0 0
        %443 = vmatpush1.bf16.msra.mxu0 0
        %444 = vmatprep.subr.bf16.mxu0 0
        %445 = vmatpush1.bf16.msra.mxu0 0
        %446 = vmatprep.subr.bf16.mxu0 0
        %447 = vmatpush1.bf16.msra.mxu0 0
        %448 = vmatprep.subr.bf16.mxu0 0
        %449 = vmatpush1.bf16.msra.mxu0 0
        %450 = vmatprep.subr.bf16.mxu0 0
        %451 = vmatpush1.bf16.msra.mxu0 0
        %452 = vmatprep.subr.bf16.mxu0 0
        %453 = vmatpush1.bf16.msra.mxu0 0
        %454 = vmatprep.subr.bf16.mxu0 0
        %455 = vmatpush1.bf16.msra.mxu0 0
        %456 = vmatprep.subr.bf16.mxu0 0
        %457 = vmatpush1.bf16.msra.mxu0 0
        %458 = vmatprep.subr.bf16.mxu0 0
        %459 = vmatpush1.bf16.msra.mxu0 0
        %460 = vmatprep.subr.bf16.mxu0 0
        %461 = vmatpush1.bf16.msra.mxu0 0
        %462 = vmatprep.mubr.bf16.mxu0 0
        %463 = vmatmul.mubr.bf16.gmra.mrb[0].mxu0 %v419
        %v464 = vpop.f32.mrb[0].mxu0
        %v465 = vadd.f32 %v364, %v464
        %v466 = vpop.f32.mrb[0].mxu0
        %v467 = vadd.f32 %v366, %v466
        %v468 = vpop.f32.mrb[0].mxu0
        %v469 = vadd.f32 %v368, %v468
        %v470 = vpop.f32.mrb[0].mxu0
        %v471 = vadd.f32 %v370, %v470
        %472 = vdwg.mxu0
        %473 = vmatprep.subr.bf16.mxu0 0
        %474 = vmatpush1.bf16.msra.mxu0 %v428
        %475 = vmatprep.subr.bf16.mxu0 0
        %476 = vmatpush1.bf16.msra.mxu0 0
        %477 = vmatprep.subr.bf16.mxu0 0
        %478 = vmatpush1.bf16.msra.mxu0 0
        %479 = vmatprep.subr.bf16.mxu0 0
        %480 = vmatpush1.bf16.msra.mxu0 0
        %481 = vmatprep.subr.bf16.mxu0 0
        %482 = vmatpush1.bf16.msra.mxu0 0
        %483 = vmatprep.subr.bf16.mxu0 0
        %484 = vmatpush1.bf16.msra.mxu0 0
        %485 = vmatprep.subr.bf16.mxu0 0
        %486 = vmatpush1.bf16.msra.mxu0 0
        %487 = vmatprep.subr.bf16.mxu0 0
        %488 = vmatpush1.bf16.msra.mxu0 0
        %489 = vmatprep.subr.bf16.mxu0 0
        %490 = vmatpush1.bf16.msra.mxu0 0
        %491 = vmatprep.subr.bf16.mxu0 0
        %492 = vmatpush1.bf16.msra.mxu0 0
        %493 = vmatprep.subr.bf16.mxu0 0
        %494 = vmatpush1.bf16.msra.mxu0 0
        %495 = vmatprep.subr.bf16.mxu0 0
        %496 = vmatpush1.bf16.msra.mxu0 0
        %497 = vmatprep.subr.bf16.mxu0 0
        %498 = vmatpush1.bf16.msra.mxu0 0
        %499 = vmatprep.subr.bf16.mxu0 0
        %500 = vmatpush1.bf16.msra.mxu0 0
        %501 = vmatprep.subr.bf16.mxu0 0
        %502 = vmatpush1.bf16.msra.mxu0 0
        %503 = vmatprep.subr.bf16.mxu0 0
        %504 = vmatpush1.bf16.msra.mxu0 0
        %505 = vmatprep.mubr.bf16.mxu0 0
        %506 = vmatmul.mubr.bf16.gmra.mrb[0].mxu0 %v419
        %v507 = vpop.f32.mrb[0].mxu0
        %v508 = vadd.f32 %v407, %v507
        %v509 = vpop.f32.mrb[0].mxu0
        %v510 = vpop.f32.mrb[0].mxu0
        %v511 = vadd.f32 %v410, %v510
        %v512 = vpop.f32.mrb[0].mxu0
        %513 = vdwg.mxu0
        %s514 = scalar_lea.vmem %s0, 16
        %v515 = vld [vmem:[%s514] sm:$0xf]
        %v516 = vld [vmem:[%s514 + $0x4] sm:$0xf]
        %v519 = vunpack.c.l.b16 %v515
        %v520 = vunpack.c.l.b16 %v516
        %v521 = vpack.c.b16 %v520, %v519
        %522 = vrot.lane.b32.xlu0 %v283, 126
        %v523 = vpop.permute.xlu0 %522
        %524 = vrot.lane.b32.xlu0 %v291, 126
        %v525 = vpop.permute.xlu0 %524
        %526 = vrot.lane.b32.xlu0 %v290, 126
        %v527 = vpop.permute.xlu0 %526
        %528 = vrot.lane.b32.xlu0 %v274, 126
        %v529 = vpop.permute.xlu0 %528
        %vm530 = vcmask 1031168
        %v531 = vsel %vm530, %v523, %v525
        %v532 = vsel %vm530, %v525, %v527
        %v533 = vsel %vm530, %v527, %v529
        %v535 = vsel %vm315, %v521, 0
        %v538 = vsel %vm319, %v531, 0
        %v541 = vsel %vm319, %v532, 0
        %v544 = vsel %vm319, %v533, 0
        %546 = vmatprep.subr.bf16.mxu0 %v541
        %547 = vmatpush1.bf16.msra.mxu0 %v538
        %548 = vmatprep.subr.bf16.mxu0 0
        %549 = vmatpush1.bf16.msra.mxu0 0
        %550 = vmatprep.subr.bf16.mxu0 0
        %551 = vmatpush1.bf16.msra.mxu0 0
        %552 = vmatprep.subr.bf16.mxu0 0
        %553 = vmatpush1.bf16.msra.mxu0 0
        %554 = vmatprep.subr.bf16.mxu0 0
        %555 = vmatpush1.bf16.msra.mxu0 0
        %556 = vmatprep.subr.bf16.mxu0 0
        %557 = vmatpush1.bf16.msra.mxu0 0
        %558 = vmatprep.subr.bf16.mxu0 0
        %559 = vmatpush1.bf16.msra.mxu0 0
        %560 = vmatprep.subr.bf16.mxu0 0
        %561 = vmatpush1.bf16.msra.mxu0 0
        %562 = vmatprep.subr.bf16.mxu0 0
        %563 = vmatpush1.bf16.msra.mxu0 0
        %564 = vmatprep.subr.bf16.mxu0 0
        %565 = vmatpush1.bf16.msra.mxu0 0
        %566 = vmatprep.subr.bf16.mxu0 0
        %567 = vmatpush1.bf16.msra.mxu0 0
        %568 = vmatprep.subr.bf16.mxu0 0
        %569 = vmatpush1.bf16.msra.mxu0 0
        %570 = vmatprep.subr.bf16.mxu0 0
        %571 = vmatpush1.bf16.msra.mxu0 0
        %572 = vmatprep.subr.bf16.mxu0 0
        %573 = vmatpush1.bf16.msra.mxu0 0
        %574 = vmatprep.subr.bf16.mxu0 0
        %575 = vmatpush1.bf16.msra.mxu0 0
        %576 = vmatprep.subr.bf16.mxu0 0
        %577 = vmatpush1.bf16.msra.mxu0 0
        %578 = vmatprep.mubr.bf16.mxu0 0
        %579 = vmatmul.mubr.bf16.gmra.mrb[0].mxu0 %v535
        %v580 = vpop.f32.mrb[0].mxu0
        %v581 = vadd.f32 0.0, %v580
        %v582 = vpop.f32.mrb[0].mxu0
        %v583 = vadd.f32 0.0, %v582
        %v584 = vpop.f32.mrb[0].mxu0
        %v585 = vadd.f32 0.0, %v584
        %v586 = vpop.f32.mrb[0].mxu0
        %v587 = vadd.f32 0.0, %v586
        %588 = vdwg.mxu0
        %589 = vmatprep.subr.bf16.mxu0 0
        %590 = vmatpush1.bf16.msra.mxu0 %v544
        %591 = vmatprep.subr.bf16.mxu0 0
        %592 = vmatpush1.bf16.msra.mxu0 0
        %593 = vmatprep.subr.bf16.mxu0 0
        %594 = vmatpush1.bf16.msra.mxu0 0
        %595 = vmatprep.subr.bf16.mxu0 0
        %596 = vmatpush1.bf16.msra.mxu0 0
        %597 = vmatprep.subr.bf16.mxu0 0
        %598 = vmatpush1.bf16.msra.mxu0 0
        %599 = vmatprep.subr.bf16.mxu0 0
        %600 = vmatpush1.bf16.msra.mxu0 0
        %601 = vmatprep.subr.bf16.mxu0 0
        %602 = vmatpush1.bf16.msra.mxu0 0
        %603 = vmatprep.subr.bf16.mxu0 0
        %604 = vmatpush1.bf16.msra.mxu0 0
        %605 = vmatprep.subr.bf16.mxu0 0
        %606 = vmatpush1.bf16.msra.mxu0 0
        %607 = vmatprep.subr.bf16.mxu0 0
        %608 = vmatpush1.bf16.msra.mxu0 0
        %609 = vmatprep.subr.bf16.mxu0 0
        %610 = vmatpush1.bf16.msra.mxu0 0
        %611 = vmatprep.subr.bf16.mxu0 0
        %612 = vmatpush1.bf16.msra.mxu0 0
        %613 = vmatprep.subr.bf16.mxu0 0
        %614 = vmatpush1.bf16.msra.mxu0 0
        %615 = vmatprep.subr.bf16.mxu0 0
        %616 = vmatpush1.bf16.msra.mxu0 0
        %617 = vmatprep.subr.bf16.mxu0 0
        %618 = vmatpush1.bf16.msra.mxu0 0
        %619 = vmatprep.subr.bf16.mxu0 0
        %620 = vmatpush1.bf16.msra.mxu0 0
        %621 = vmatprep.mubr.bf16.mxu0 0
        %622 = vmatmul.mubr.bf16.gmra.mrb[0].mxu0 %v535
        %v623 = vpop.f32.mrb[0].mxu0
        %v624 = vadd.f32 0.0, %v623
        %v625 = vpop.f32.mrb[0].mxu0
        %v626 = vpop.f32.mrb[0].mxu0
        %v627 = vadd.f32 0.0, %v626
        %v628 = vpop.f32.mrb[0].mxu0
        %629 = vdwg.mxu0
        %v630 = vadd.f32 %v465, %v581
        %v631 = vadd.f32 %v467, %v583
        %v632 = vadd.f32 %v508, %v624
        %v633 = vadd.f32 %v469, %v585
        %v634 = vadd.f32 %v471, %v587
        %v635 = vadd.f32 %v511, %v627
        %s636 = scalar_lea.vmem %s0, 24
        %v637 = vld [vmem:[%s636] sm:$0xf]
        %v638 = vld [vmem:[%s636 + $0x4] sm:$0xf]
        %v641 = vunpack.c.l.b16 %v637
        %v642 = vunpack.c.l.b16 %v638
        %v643 = vpack.c.b16 %v642, %v641
        %644 = vrot.lane.b32.xlu0 %v283, 110
        %v645 = vpop.permute.xlu0 %644
        %646 = vrot.lane.b32.xlu0 %v291, 110
        %v647 = vpop.permute.xlu0 %646
        %648 = vrot.lane.b32.xlu0 %v290, 110
        %v649 = vpop.permute.xlu0 %648
        %650 = vrot.lane.b32.xlu0 %v274, 110
        %v651 = vpop.permute.xlu0 %650
        %vm652 = vcmask 900096
        %v653 = vsel %vm652, %v645, %v647
        %v654 = vsel %vm652, %v647, %v649
        %v655 = vsel %vm652, %v649, %v651
        %v657 = vsel %vm315, %v643, 0
        %v660 = vsel %vm319, %v653, 0
        %v663 = vsel %vm319, %v654, 0
        %v666 = vsel %vm319, %v655, 0
        %668 = vmatprep.subr.bf16.mxu0 %v663
        %669 = vmatpush1.bf16.msra.mxu0 %v660
        %670 = vmatprep.subr.bf16.mxu0 0
        %671 = vmatpush1.bf16.msra.mxu0 0
        %672 = vmatprep.subr.bf16.mxu0 0
        %673 = vmatpush1.bf16.msra.mxu0 0
        %674 = vmatprep.subr.bf16.mxu0 0
        %675 = vmatpush1.bf16.msra.mxu0 0
        %676 = vmatprep.subr.bf16.mxu0 0
        %677 = vmatpush1.bf16.msra.mxu0 0
        %678 = vmatprep.subr.bf16.mxu0 0
        %679 = vmatpush1.bf16.msra.mxu0 0
        %680 = vmatprep.subr.bf16.mxu0 0
        %681 = vmatpush1.bf16.msra.mxu0 0
        %682 = vmatprep.subr.bf16.mxu0 0
        %683 = vmatpush1.bf16.msra.mxu0 0
        %684 = vmatprep.subr.bf16.mxu0 0
        %685 = vmatpush1.bf16.msra.mxu0 0
        %686 = vmatprep.subr.bf16.mxu0 0
        %687 = vmatpush1.bf16.msra.mxu0 0
        %688 = vmatprep.subr.bf16.mxu0 0
        %689 = vmatpush1.bf16.msra.mxu0 0
        %690 = vmatprep.subr.bf16.mxu0 0
        %691 = vmatpush1.bf16.msra.mxu0 0
        %692 = vmatprep.subr.bf16.mxu0 0
        %693 = vmatpush1.bf16.msra.mxu0 0
        %694 = vmatprep.subr.bf16.mxu0 0
        %695 = vmatpush1.bf16.msra.mxu0 0
        %696 = vmatprep.subr.bf16.mxu0 0
        %697 = vmatpush1.bf16.msra.mxu0 0
        %698 = vmatprep.subr.bf16.mxu0 0
        %699 = vmatpush1.bf16.msra.mxu0 0
        %700 = vmatprep.mubr.bf16.mxu0 0
        %701 = vmatmul.mubr.bf16.gmra.mrb[0].mxu0 %v657
        %v702 = vpop.f32.mrb[0].mxu0
        %v703 = vadd.f32 0.0, %v702
        %v704 = vpop.f32.mrb[0].mxu0
        %v705 = vadd.f32 0.0, %v704
        %v706 = vpop.f32.mrb[0].mxu0
        %v707 = vadd.f32 0.0, %v706
        %v708 = vpop.f32.mrb[0].mxu0
        %v709 = vadd.f32 0.0, %v708
        %710 = vdwg.mxu0
        %711 = vmatprep.subr.bf16.mxu0 0
        %712 = vmatpush1.bf16.msra.mxu0 %v666
        %713 = vmatprep.subr.bf16.mxu0 0
        %714 = vmatpush1.bf16.msra.mxu0 0
        %715 = vmatprep.subr.bf16.mxu0 0
        %716 = vmatpush1.bf16.msra.mxu0 0
        %717 = vmatprep.subr.bf16.mxu0 0
        %718 = vmatpush1.bf16.msra.mxu0 0
        %719 = vmatprep.subr.bf16.mxu0 0
        %720 = vmatpush1.bf16.msra.mxu0 0
        %721 = vmatprep.subr.bf16.mxu0 0
        %722 = vmatpush1.bf16.msra.mxu0 0
        %723 = vmatprep.subr.bf16.mxu0 0
        %724 = vmatpush1.bf16.msra.mxu0 0
        %725 = vmatprep.subr.bf16.mxu0 0
        %726 = vmatpush1.bf16.msra.mxu0 0
        %727 = vmatprep.subr.bf16.mxu0 0
        %728 = vmatpush1.bf16.msra.mxu0 0
        %729 = vmatprep.subr.bf16.mxu0 0
        %730 = vmatpush1.bf16.msra.mxu0 0
        %731 = vmatprep.subr.bf16.mxu0 0
        %732 = vmatpush1.bf16.msra.mxu0 0
        %733 = vmatprep.subr.bf16.mxu0 0
        %734 = vmatpush1.bf16.msra.mxu0 0
        %735 = vmatprep.subr.bf16.mxu0 0
        %736 = vmatpush1.bf16.msra.mxu0 0
        %737 = vmatprep.subr.bf16.mxu0 0
        %738 = vmatpush1.bf16.msra.mxu0 0
        %739 = vmatprep.subr.bf16.mxu0 0
        %740 = vmatpush1.bf16.msra.mxu0 0
        %741 = vmatprep.subr.bf16.mxu0 0
        %742 = vmatpush1.bf16.msra.mxu0 0
        %743 = vmatprep.mubr.bf16.mxu0 0
        %744 = vmatmul.mubr.bf16.gmra.mrb[0].mxu0 %v657
        %v745 = vpop.f32.mrb[0].mxu0
        %v746 = vadd.f32 0.0, %v745
        %v747 = vpop.f32.mrb[0].mxu0
        %v748 = vpop.f32.mrb[0].mxu0
        %v749 = vadd.f32 0.0, %v748
        %v750 = vpop.f32.mrb[0].mxu0
        %751 = vdwg.mxu0
        %v752 = vadd.f32 %v630, %v703
        %v753 = vadd.f32 %v631, %v705
        %v754 = vadd.f32 %v632, %v746
        %v755 = vadd.f32 %v633, %v707
        %v756 = vadd.f32 %v634, %v709
        %v757 = vadd.f32 %v635, %v749
        %s758 = scalar_lea.vmem %s0, 32
        %v759 = vld [vmem:[%s758] sm:$0xf]
        %v760 = vld [vmem:[%s758 + $0x4] sm:$0xf]
        %v763 = vunpack.c.l.b16 %v759
        %v764 = vunpack.c.l.b16 %v760
        %v765 = vpack.c.b16 %v764, %v763
        %766 = vrot.lane.b32.xlu0 %v283, 109
        %v767 = vpop.permute.xlu0 %766
        %768 = vrot.lane.b32.xlu0 %v291, 109
        %v769 = vpop.permute.xlu0 %768
        %770 = vrot.lane.b32.xlu0 %v290, 109
        %v771 = vpop.permute.xlu0 %770
        %772 = vrot.lane.b32.xlu0 %v274, 109
        %v773 = vpop.permute.xlu0 %772
        %vm774 = vcmask 891904
        %v775 = vsel %vm774, %v767, %v769
        %v776 = vsel %vm774, %v769, %v771
        %v777 = vsel %vm774, %v771, %v773
        %v779 = vsel %vm315, %v765, 0
        %v782 = vsel %vm319, %v775, 0
        %v785 = vsel %vm319, %v776, 0
        %v788 = vsel %vm319, %v777, 0
        %790 = vmatprep.subr.bf16.mxu0 %v785
        %791 = vmatpush1.bf16.msra.mxu0 %v782
        %792 = vmatprep.subr.bf16.mxu0 0
        %793 = vmatpush1.bf16.msra.mxu0 0
        %794 = vmatprep.subr.bf16.mxu0 0
        %795 = vmatpush1.bf16.msra.mxu0 0
        %796 = vmatprep.subr.bf16.mxu0 0
        %797 = vmatpush1.bf16.msra.mxu0 0
        %798 = vmatprep.subr.bf16.mxu0 0
        %799 = vmatpush1.bf16.msra.mxu0 0
        %800 = vmatprep.subr.bf16.mxu0 0
        %801 = vmatpush1.bf16.msra.mxu0 0
        %802 = vmatprep.subr.bf16.mxu0 0
        %803 = vmatpush1.bf16.msra.mxu0 0
        %804 = vmatprep.subr.bf16.mxu0 0
        %805 = vmatpush1.bf16.msra.mxu0 0
        %806 = vmatprep.subr.bf16.mxu0 0
        %807 = vmatpush1.bf16.msra.mxu0 0
        %808 = vmatprep.subr.bf16.mxu0 0
        %809 = vmatpush1.bf16.msra.mxu0 0
        %810 = vmatprep.subr.bf16.mxu0 0
        %811 = vmatpush1.bf16.msra.mxu0 0
        %812 = vmatprep.subr.bf16.mxu0 0
        %813 = vmatpush1.bf16.msra.mxu0 0
        %814 = vmatprep.subr.bf16.mxu0 0
        %815 = vmatpush1.bf16.msra.mxu0 0
        %816 = vmatprep.subr.bf16.mxu0 0
        %817 = vmatpush1.bf16.msra.mxu0 0
        %818 = vmatprep.subr.bf16.mxu0 0
        %819 = vmatpush1.bf16.msra.mxu0 0
        %820 = vmatprep.subr.bf16.mxu0 0
        %821 = vmatpush1.bf16.msra.mxu0 0
        %822 = vmatprep.mubr.bf16.mxu0 0
        %823 = vmatmul.mubr.bf16.gmra.mrb[0].mxu0 %v779
        %v824 = vpop.f32.mrb[0].mxu0
        %v825 = vadd.f32 0.0, %v824
        %v826 = vpop.f32.mrb[0].mxu0
        %v827 = vadd.f32 0.0, %v826
        %v828 = vpop.f32.mrb[0].mxu0
        %v829 = vadd.f32 0.0, %v828
        %v830 = vpop.f32.mrb[0].mxu0
        %v831 = vadd.f32 0.0, %v830
        %832 = vdwg.mxu0
        %833 = vmatprep.subr.bf16.mxu0 0
        %834 = vmatpush1.bf16.msra.mxu0 %v788
        %835 = vmatprep.subr.bf16.mxu0 0
        %836 = vmatpush1.bf16.msra.mxu0 0
        %837 = vmatprep.subr.bf16.mxu0 0
        %838 = vmatpush1.bf16.msra.mxu0 0
        %839 = vmatprep.subr.bf16.mxu0 0
        %840 = vmatpush1.bf16.msra.mxu0 0
        %841 = vmatprep.subr.bf16.mxu0 0
        %842 = vmatpush1.bf16.msra.mxu0 0
        %843 = vmatprep.subr.bf16.mxu0 0
        %844 = vmatpush1.bf16.msra.mxu0 0
        %845 = vmatprep.subr.bf16.mxu0 0
        %846 = vmatpush1.bf16.msra.mxu0 0
        %847 = vmatprep.subr.bf16.mxu0 0
        %848 = vmatpush1.bf16.msra.mxu0 0
        %849 = vmatprep.subr.bf16.mxu0 0
        %850 = vmatpush1.bf16.msra.mxu0 0
        %851 = vmatprep.subr.bf16.mxu0 0
        %852 = vmatpush1.bf16.msra.mxu0 0
        %853 = vmatprep.subr.bf16.mxu0 0
        %854 = vmatpush1.bf16.msra.mxu0 0
        %855 = vmatprep.subr.bf16.mxu0 0
        %856 = vmatpush1.bf16.msra.mxu0 0
        %857 = vmatprep.subr.bf16.mxu0 0
        %858 = vmatpush1.bf16.msra.mxu0 0
        %859 = vmatprep.subr.bf16.mxu0 0
        %860 = vmatpush1.bf16.msra.mxu0 0
        %861 = vmatprep.subr.bf16.mxu0 0
        %862 = vmatpush1.bf16.msra.mxu0 0
        %863 = vmatprep.subr.bf16.mxu0 0
        %864 = vmatpush1.bf16.msra.mxu0 0
        %865 = vmatprep.mubr.bf16.mxu0 0
        %866 = vmatmul.mubr.bf16.gmra.mrb[0].mxu0 %v779
        %v867 = vpop.f32.mrb[0].mxu0
        %v868 = vadd.f32 0.0, %v867
        %v869 = vpop.f32.mrb[0].mxu0
        %v870 = vpop.f32.mrb[0].mxu0
        %v871 = vadd.f32 0.0, %v870
        %v872 = vpop.f32.mrb[0].mxu0
        %873 = vdwg.mxu0
        %v874 = vadd.f32 %v752, %v825
        %v875 = vadd.f32 %v753, %v827
        %v876 = vadd.f32 %v754, %v868
        %v877 = vadd.f32 %v755, %v829
        %v878 = vadd.f32 %v756, %v831
        %v879 = vadd.f32 %v757, %v871
        %s880 = scalar_lea.vmem %s0, 40
        %v881 = vld [vmem:[%s880] sm:$0xf]
        %v882 = vld [vmem:[%s880 + $0x4] sm:$0xf]
        %v885 = vunpack.c.l.b16 %v881
        %v886 = vunpack.c.l.b16 %v882
        %v887 = vpack.c.b16 %v886, %v885
        %888 = vrot.lane.b32.xlu0 %v283, 108
        %v889 = vpop.permute.xlu0 %888
        %890 = vrot.lane.b32.xlu0 %v291, 108
        %v891 = vpop.permute.xlu0 %890
        %892 = vrot.lane.b32.xlu0 %v290, 108
        %v893 = vpop.permute.xlu0 %892
        %894 = vrot.lane.b32.xlu0 %v274, 108
        %v895 = vpop.permute.xlu0 %894
        %vm896 = vcmask 883712
        %v897 = vsel %vm896, %v889, %v891
        %v898 = vsel %vm896, %v891, %v893
        %v899 = vsel %vm896, %v893, %v895
        %v901 = vsel %vm315, %v887, 0
        %v904 = vsel %vm319, %v897, 0
        %v907 = vsel %vm319, %v898, 0
        %v910 = vsel %vm319, %v899, 0
        %912 = vmatprep.subr.bf16.mxu0 %v907
        %913 = vmatpush1.bf16.msra.mxu0 %v904
        %914 = vmatprep.subr.bf16.mxu0 0
        %915 = vmatpush1.bf16.msra.mxu0 0
        %916 = vmatprep.subr.bf16.mxu0 0
        %917 = vmatpush1.bf16.msra.mxu0 0
        %918 = vmatprep.subr.bf16.mxu0 0
        %919 = vmatpush1.bf16.msra.mxu0 0
        %920 = vmatprep.subr.bf16.mxu0 0
        %921 = vmatpush1.bf16.msra.mxu0 0
        %922 = vmatprep.subr.bf16.mxu0 0
        %923 = vmatpush1.bf16.msra.mxu0 0
        %924 = vmatprep.subr.bf16.mxu0 0
        %925 = vmatpush1.bf16.msra.mxu0 0
        %926 = vmatprep.subr.bf16.mxu0 0
        %927 = vmatpush1.bf16.msra.mxu0 0
        %928 = vmatprep.subr.bf16.mxu0 0
        %929 = vmatpush1.bf16.msra.mxu0 0
        %930 = vmatprep.subr.bf16.mxu0 0
        %931 = vmatpush1.bf16.msra.mxu0 0
        %932 = vmatprep.subr.bf16.mxu0 0
        %933 = vmatpush1.bf16.msra.mxu0 0
        %934 = vmatprep.subr.bf16.mxu0 0
        %935 = vmatpush1.bf16.msra.mxu0 0
        %936 = vmatprep.subr.bf16.mxu0 0
        %937 = vmatpush1.bf16.msra.mxu0 0
        %938 = vmatprep.subr.bf16.mxu0 0
        %939 = vmatpush1.bf16.msra.mxu0 0
        %940 = vmatprep.subr.bf16.mxu0 0
        %941 = vmatpush1.bf16.msra.mxu0 0
        %942 = vmatprep.subr.bf16.mxu0 0
        %943 = vmatpush1.bf16.msra.mxu0 0
        %944 = vmatprep.mubr.bf16.mxu0 0
        %945 = vmatmul.mubr.bf16.gmra.mrb[0].mxu0 %v901
        %v946 = vpop.f32.mrb[0].mxu0
        %v947 = vadd.f32 0.0, %v946
        %v948 = vpop.f32.mrb[0].mxu0
        %v949 = vadd.f32 0.0, %v948
        %v950 = vpop.f32.mrb[0].mxu0
        %v951 = vadd.f32 0.0, %v950
        %v952 = vpop.f32.mrb[0].mxu0
        %v953 = vadd.f32 0.0, %v952
        %954 = vdwg.mxu0
        %955 = vmatprep.subr.bf16.mxu0 0
        %956 = vmatpush1.bf16.msra.mxu0 %v910
        %957 = vmatprep.subr.bf16.mxu0 0
        %958 = vmatpush1.bf16.msra.mxu0 0
        %959 = vmatprep.subr.bf16.mxu0 0
        %960 = vmatpush1.bf16.msra.mxu0 0
        %961 = vmatprep.subr.bf16.mxu0 0
        %962 = vmatpush1.bf16.msra.mxu0 0
        %963 = vmatprep.subr.bf16.mxu0 0
        %964 = vmatpush1.bf16.msra.mxu0 0
        %965 = vmatprep.subr.bf16.mxu0 0
        %966 = vmatpush1.bf16.msra.mxu0 0
        %967 = vmatprep.subr.bf16.mxu0 0
        %968 = vmatpush1.bf16.msra.mxu0 0
        %969 = vmatprep.subr.bf16.mxu0 0
        %970 = vmatpush1.bf16.msra.mxu0 0
        %971 = vmatprep.subr.bf16.mxu0 0
        %972 = vmatpush1.bf16.msra.mxu0 0
        %973 = vmatprep.subr.bf16.mxu0 0
        %974 = vmatpush1.bf16.msra.mxu0 0
        %975 = vmatprep.subr.bf16.mxu0 0
        %976 = vmatpush1.bf16.msra.mxu0 0
        %977 = vmatprep.subr.bf16.mxu0 0
        %978 = vmatpush1.bf16.msra.mxu0 0
        %979 = vmatprep.subr.bf16.mxu0 0
        %980 = vmatpush1.bf16.msra.mxu0 0
        %981 = vmatprep.subr.bf16.mxu0 0
        %982 = vmatpush1.bf16.msra.mxu0 0
        %983 = vmatprep.subr.bf16.mxu0 0
        %984 = vmatpush1.bf16.msra.mxu0 0
        %985 = vmatprep.subr.bf16.mxu0 0
        %986 = vmatpush1.bf16.msra.mxu0 0
        %987 = vmatprep.mubr.bf16.mxu0 0
        %988 = vmatmul.mubr.bf16.gmra.mrb[0].mxu0 %v901
        %v989 = vpop.f32.mrb[0].mxu0
        %v990 = vadd.f32 0.0, %v989
        %v991 = vpop.f32.mrb[0].mxu0
        %v992 = vpop.f32.mrb[0].mxu0
        %v993 = vadd.f32 0.0, %v992
        %v994 = vpop.f32.mrb[0].mxu0
        %995 = vdwg.mxu0
        %v996 = vadd.f32 %v874, %v947
        %v997 = vadd.f32 %v875, %v949
        %v998 = vadd.f32 %v876, %v990
        %v999 = vadd.f32 %v877, %v951
        %v1000 = vadd.f32 %v878, %v953
        %v1001 = vadd.f32 %v879, %v993
        %s1002 = scalar_lea.vmem %s0, 48
        %v1003 = vld [vmem:[%s1002] sm:$0xf]
        %v1004 = vld [vmem:[%s1002 + $0x4] sm:$0xf]
        %v1007 = vunpack.c.l.b16 %v1003
        %v1008 = vunpack.c.l.b16 %v1004
        %v1009 = vpack.c.b16 %v1008, %v1007
        %1010 = vrot.lane.b32.xlu0 %v283, 92
        %v1011 = vpop.permute.xlu0 %1010
        %1012 = vrot.lane.b32.xlu0 %v291, 92
        %v1013 = vpop.permute.xlu0 %1012
        %1014 = vrot.lane.b32.xlu0 %v290, 92
        %v1015 = vpop.permute.xlu0 %1014
        %1016 = vrot.lane.b32.xlu0 %v274, 92
        %v1017 = vpop.permute.xlu0 %1016
        %vm1018 = vcmask 752640
        %v1019 = vsel %vm1018, %v1011, %v1013
        %v1020 = vsel %vm1018, %v1013, %v1015
        %v1021 = vsel %vm1018, %v1015, %v1017
        %v1023 = vsel %vm315, %v1009, 0
        %v1026 = vsel %vm319, %v1019, 0
        %v1029 = vsel %vm319, %v1020, 0
        %v1032 = vsel %vm319, %v1021, 0
        %1034 = vmatprep.subr.bf16.mxu0 %v1029
        %1035 = vmatpush1.bf16.msra.mxu0 %v1026
        %1036 = vmatprep.subr.bf16.mxu0 0
        %1037 = vmatpush1.bf16.msra.mxu0 0
        %1038 = vmatprep.subr.bf16.mxu0 0
        %1039 = vmatpush1.bf16.msra.mxu0 0
        %1040 = vmatprep.subr.bf16.mxu0 0
        %1041 = vmatpush1.bf16.msra.mxu0 0
        %1042 = vmatprep.subr.bf16.mxu0 0
        %1043 = vmatpush1.bf16.msra.mxu0 0
        %1044 = vmatprep.subr.bf16.mxu0 0
        %1045 = vmatpush1.bf16.msra.mxu0 0
        %1046 = vmatprep.subr.bf16.mxu0 0
        %1047 = vmatpush1.bf16.msra.mxu0 0
        %1048 = vmatprep.subr.bf16.mxu0 0
        %1049 = vmatpush1.bf16.msra.mxu0 0
        %1050 = vmatprep.subr.bf16.mxu0 0
        %1051 = vmatpush1.bf16.msra.mxu0 0
        %1052 = vmatprep.subr.bf16.mxu0 0
        %1053 = vmatpush1.bf16.msra.mxu0 0
        %1054 = vmatprep.subr.bf16.mxu0 0
        %1055 = vmatpush1.bf16.msra.mxu0 0
        %1056 = vmatprep.subr.bf16.mxu0 0
        %1057 = vmatpush1.bf16.msra.mxu0 0
        %1058 = vmatprep.subr.bf16.mxu0 0
        %1059 = vmatpush1.bf16.msra.mxu0 0
        %1060 = vmatprep.subr.bf16.mxu0 0
        %1061 = vmatpush1.bf16.msra.mxu0 0
        %1062 = vmatprep.subr.bf16.mxu0 0
        %1063 = vmatpush1.bf16.msra.mxu0 0
        %1064 = vmatprep.subr.bf16.mxu0 0
        %1065 = vmatpush1.bf16.msra.mxu0 0
        %1066 = vmatprep.mubr.bf16.mxu0 0
        %1067 = vmatmul.mubr.bf16.gmra.mrb[0].mxu0 %v1023
        %v1068 = vpop.f32.mrb[0].mxu0
        %v1069 = vadd.f32 0.0, %v1068
        %v1070 = vpop.f32.mrb[0].mxu0
        %v1071 = vadd.f32 0.0, %v1070
        %v1072 = vpop.f32.mrb[0].mxu0
        %v1073 = vadd.f32 0.0, %v1072
        %v1074 = vpop.f32.mrb[0].mxu0
        %v1075 = vadd.f32 0.0, %v1074
        %1076 = vdwg.mxu0
        %1077 = vmatprep.subr.bf16.mxu0 0
        %1078 = vmatpush1.bf16.msra.mxu0 %v1032
        %1079 = vmatprep.subr.bf16.mxu0 0
        %1080 = vmatpush1.bf16.msra.mxu0 0
        %1081 = vmatprep.subr.bf16.mxu0 0
        %1082 = vmatpush1.bf16.msra.mxu0 0
        %1083 = vmatprep.subr.bf16.mxu0 0
        %1084 = vmatpush1.bf16.msra.mxu0 0
        %1085 = vmatprep.subr.bf16.mxu0 0
        %1086 = vmatpush1.bf16.msra.mxu0 0
        %1087 = vmatprep.subr.bf16.mxu0 0
        %1088 = vmatpush1.bf16.msra.mxu0 0
        %1089 = vmatprep.subr.bf16.mxu0 0
        %1090 = vmatpush1.bf16.msra.mxu0 0
        %1091 = vmatprep.subr.bf16.mxu0 0
        %1092 = vmatpush1.bf16.msra.mxu0 0
        %1093 = vmatprep.subr.bf16.mxu0 0
        %1094 = vmatpush1.bf16.msra.mxu0 0
        %1095 = vmatprep.subr.bf16.mxu0 0
        %1096 = vmatpush1.bf16.msra.mxu0 0
        %1097 = vmatprep.subr.bf16.mxu0 0
        %1098 = vmatpush1.bf16.msra.mxu0 0
        %1099 = vmatprep.subr.bf16.mxu0 0
        %1100 = vmatpush1.bf16.msra.mxu0 0
        %1101 = vmatprep.subr.bf16.mxu0 0
        %1102 = vmatpush1.bf16.msra.mxu0 0
        %1103 = vmatprep.subr.bf16.mxu0 0
        %1104 = vmatpush1.bf16.msra.mxu0 0
        %1105 = vmatprep.subr.bf16.mxu0 0
        %1106 = vmatpush1.bf16.msra.mxu0 0
        %1107 = vmatprep.subr.bf16.mxu0 0
        %1108 = vmatpush1.bf16.msra.mxu0 0
        %1109 = vmatprep.mubr.bf16.mxu0 0
        %1110 = vmatmul.mubr.bf16.gmra.mrb[0].mxu0 %v1023
        %v1111 = vpop.f32.mrb[0].mxu0
        %v1112 = vadd.f32 0.0, %v1111
        %v1113 = vpop.f32.mrb[0].mxu0
        %v1114 = vpop.f32.mrb[0].mxu0
        %v1115 = vadd.f32 0.0, %v1114
        %v1116 = vpop.f32.mrb[0].mxu0
        %1117 = vdwg.mxu0
        %v1118 = vadd.f32 %v996, %v1069
        %v1119 = vadd.f32 %v997, %v1071
        %v1120 = vadd.f32 %v998, %v1112
        %v1121 = vadd.f32 %v999, %v1073
        %v1122 = vadd.f32 %v1000, %v1075
        %v1123 = vadd.f32 %v1001, %v1115
        %s1124 = scalar_lea.vmem %s0, 56
        %v1125 = vld [vmem:[%s1124] sm:$0xf]
        %v1126 = vld [vmem:[%s1124 + $0x4] sm:$0xf]
        %v1129 = vunpack.c.l.b16 %v1125
        %v1130 = vunpack.c.l.b16 %v1126
        %v1131 = vpack.c.b16 %v1130, %v1129
        %1132 = vrot.lane.b32.xlu0 %v283, 91
        %v1133 = vpop.permute.xlu0 %1132
        %1134 = vrot.lane.b32.xlu0 %v291, 91
        %v1135 = vpop.permute.xlu0 %1134
        %1136 = vrot.lane.b32.xlu0 %v290, 91
        %v1137 = vpop.permute.xlu0 %1136
        %1138 = vrot.lane.b32.xlu0 %v274, 91
        %v1139 = vpop.permute.xlu0 %1138
        %vm1140 = vcmask 744448
        %v1141 = vsel %vm1140, %v1133, %v1135
        %v1142 = vsel %vm1140, %v1135, %v1137
        %v1143 = vsel %vm1140, %v1137, %v1139
        %v1145 = vsel %vm315, %v1131, 0
        %v1148 = vsel %vm319, %v1141, 0
        %v1151 = vsel %vm319, %v1142, 0
        %v1154 = vsel %vm319, %v1143, 0
        %1156 = vmatprep.subr.bf16.mxu0 %v1151
        %1157 = vmatpush1.bf16.msra.mxu0 %v1148
        %1158 = vmatprep.subr.bf16.mxu0 0
        %1159 = vmatpush1.bf16.msra.mxu0 0
        %1160 = vmatprep.subr.bf16.mxu0 0
        %1161 = vmatpush1.bf16.msra.mxu0 0
        %1162 = vmatprep.subr.bf16.mxu0 0
        %1163 = vmatpush1.bf16.msra.mxu0 0
        %1164 = vmatprep.subr.bf16.mxu0 0
        %1165 = vmatpush1.bf16.msra.mxu0 0
        %1166 = vmatprep.subr.bf16.mxu0 0
        %1167 = vmatpush1.bf16.msra.mxu0 0
        %1168 = vmatprep.subr.bf16.mxu0 0
        %1169 = vmatpush1.bf16.msra.mxu0 0
        %1170 = vmatprep.subr.bf16.mxu0 0
        %1171 = vmatpush1.bf16.msra.mxu0 0
        %1172 = vmatprep.subr.bf16.mxu0 0
        %1173 = vmatpush1.bf16.msra.mxu0 0
        %1174 = vmatprep.subr.bf16.mxu0 0
        %1175 = vmatpush1.bf16.msra.mxu0 0
        %1176 = vmatprep.subr.bf16.mxu0 0
        %1177 = vmatpush1.bf16.msra.mxu0 0
        %1178 = vmatprep.subr.bf16.mxu0 0
        %1179 = vmatpush1.bf16.msra.mxu0 0
        %1180 = vmatprep.subr.bf16.mxu0 0
        %1181 = vmatpush1.bf16.msra.mxu0 0
        %1182 = vmatprep.subr.bf16.mxu0 0
        %1183 = vmatpush1.bf16.msra.mxu0 0
        %1184 = vmatprep.subr.bf16.mxu0 0
        %1185 = vmatpush1.bf16.msra.mxu0 0
        %1186 = vmatprep.subr.bf16.mxu0 0
        %1187 = vmatpush1.bf16.msra.mxu0 0
        %1188 = vmatprep.mubr.bf16.mxu0 0
        %1189 = vmatmul.mubr.bf16.gmra.mrb[0].mxu0 %v1145
        %v1190 = vpop.f32.mrb[0].mxu0
        %v1191 = vadd.f32 0.0, %v1190
        %v1192 = vpop.f32.mrb[0].mxu0
        %v1193 = vadd.f32 0.0, %v1192
        %v1194 = vpop.f32.mrb[0].mxu0
        %v1195 = vadd.f32 0.0, %v1194
        %v1196 = vpop.f32.mrb[0].mxu0
        %v1197 = vadd.f32 0.0, %v1196
        %1198 = vdwg.mxu0
        %1199 = vmatprep.subr.bf16.mxu0 0
        %1200 = vmatpush1.bf16.msra.mxu0 %v1154
        %1201 = vmatprep.subr.bf16.mxu0 0
        %1202 = vmatpush1.bf16.msra.mxu0 0
        %1203 = vmatprep.subr.bf16.mxu0 0
        %1204 = vmatpush1.bf16.msra.mxu0 0
        %1205 = vmatprep.subr.bf16.mxu0 0
        %1206 = vmatpush1.bf16.msra.mxu0 0
        %1207 = vmatprep.subr.bf16.mxu0 0
        %1208 = vmatpush1.bf16.msra.mxu0 0
        %1209 = vmatprep.subr.bf16.mxu0 0
        %1210 = vmatpush1.bf16.msra.mxu0 0
        %1211 = vmatprep.subr.bf16.mxu0 0
        %1212 = vmatpush1.bf16.msra.mxu0 0
        %1213 = vmatprep.subr.bf16.mxu0 0
        %1214 = vmatpush1.bf16.msra.mxu0 0
        %1215 = vmatprep.subr.bf16.mxu0 0
        %1216 = vmatpush1.bf16.msra.mxu0 0
        %1217 = vmatprep.subr.bf16.mxu0 0
        %1218 = vmatpush1.bf16.msra.mxu0 0
        %1219 = vmatprep.subr.bf16.mxu0 0
        %1220 = vmatpush1.bf16.msra.mxu0 0
        %1221 = vmatprep.subr.bf16.mxu0 0
        %1222 = vmatpush1.bf16.msra.mxu0 0
        %1223 = vmatprep.subr.bf16.mxu0 0
        %1224 = vmatpush1.bf16.msra.mxu0 0
        %1225 = vmatprep.subr.bf16.mxu0 0
        %1226 = vmatpush1.bf16.msra.mxu0 0
        %1227 = vmatprep.subr.bf16.mxu0 0
        %1228 = vmatpush1.bf16.msra.mxu0 0
        %1229 = vmatprep.subr.bf16.mxu0 0
        %1230 = vmatpush1.bf16.msra.mxu0 0
        %1231 = vmatprep.mubr.bf16.mxu0 0
        %1232 = vmatmul.mubr.bf16.gmra.mrb[0].mxu0 %v1145
        %v1233 = vpop.f32.mrb[0].mxu0
        %v1234 = vadd.f32 0.0, %v1233
        %v1235 = vpop.f32.mrb[0].mxu0
        %v1236 = vpop.f32.mrb[0].mxu0
        %v1237 = vadd.f32 0.0, %v1236
        %v1238 = vpop.f32.mrb[0].mxu0
        %1239 = vdwg.mxu0
        %v1240 = vadd.f32 %v1118, %v1191
        %v1241 = vadd.f32 %v1119, %v1193
        %v1242 = vadd.f32 %v1120, %v1234
        %v1243 = vadd.f32 %v1121, %v1195
        %v1244 = vadd.f32 %v1122, %v1197
        %v1245 = vadd.f32 %v1123, %v1237
        %s1246 = scalar_lea.vmem %s0, 64
        %v1247 = vld [vmem:[%s1246] sm:$0xf]
        %v1248 = vld [vmem:[%s1246 + $0x4] sm:$0xf]
        %v1251 = vunpack.c.l.b16 %v1247
        %v1252 = vunpack.c.l.b16 %v1248
        %v1253 = vpack.c.b16 %v1252, %v1251
        %1254 = vrot.lane.b32.xlu0 %v283, 90
        %v1255 = vpop.permute.xlu0 %1254
        %1256 = vrot.lane.b32.xlu0 %v291, 90
        %v1257 = vpop.permute.xlu0 %1256
        %1258 = vrot.lane.b32.xlu0 %v290, 90
        %v1259 = vpop.permute.xlu0 %1258
        %1260 = vrot.lane.b32.xlu0 %v274, 90
        %v1261 = vpop.permute.xlu0 %1260
        %vm1262 = vcmask 736256
        %v1263 = vsel %vm1262, %v1255, %v1257
        %v1264 = vsel %vm1262, %v1257, %v1259
        %v1265 = vsel %vm1262, %v1259, %v1261
        %v1267 = vsel %vm315, %v1253, 0
        %v1270 = vsel %vm319, %v1263, 0
        %v1273 = vsel %vm319, %v1264, 0
        %v1276 = vsel %vm319, %v1265, 0
        %1278 = vmatprep.subr.bf16.mxu0 %v1273
        %1279 = vmatpush1.bf16.msra.mxu0 %v1270
        %1280 = vmatprep.subr.bf16.mxu0 0
        %1281 = vmatpush1.bf16.msra.mxu0 0
        %1282 = vmatprep.subr.bf16.mxu0 0
        %1283 = vmatpush1.bf16.msra.mxu0 0
        %1284 = vmatprep.subr.bf16.mxu0 0
        %1285 = vmatpush1.bf16.msra.mxu0 0
        %1286 = vmatprep.subr.bf16.mxu0 0
        %1287 = vmatpush1.bf16.msra.mxu0 0
        %1288 = vmatprep.subr.bf16.mxu0 0
        %1289 = vmatpush1.bf16.msra.mxu0 0
        %1290 = vmatprep.subr.bf16.mxu0 0
        %1291 = vmatpush1.bf16.msra.mxu0 0
        %1292 = vmatprep.subr.bf16.mxu0 0
        %1293 = vmatpush1.bf16.msra.mxu0 0
        %1294 = vmatprep.subr.bf16.mxu0 0
        %1295 = vmatpush1.bf16.msra.mxu0 0
        %1296 = vmatprep.subr.bf16.mxu0 0
        %1297 = vmatpush1.bf16.msra.mxu0 0
        %1298 = vmatprep.subr.bf16.mxu0 0
        %1299 = vmatpush1.bf16.msra.mxu0 0
        %1300 = vmatprep.subr.bf16.mxu0 0
        %1301 = vmatpush1.bf16.msra.mxu0 0
        %1302 = vmatprep.subr.bf16.mxu0 0
        %1303 = vmatpush1.bf16.msra.mxu0 0
        %1304 = vmatprep.subr.bf16.mxu0 0
        %1305 = vmatpush1.bf16.msra.mxu0 0
        %1306 = vmatprep.subr.bf16.mxu0 0
        %1307 = vmatpush1.bf16.msra.mxu0 0
        %1308 = vmatprep.subr.bf16.mxu0 0
        %1309 = vmatpush1.bf16.msra.mxu0 0
        %1310 = vmatprep.mubr.bf16.mxu0 0
        %1311 = vmatmul.mubr.bf16.gmra.mrb[0].mxu0 %v1267
        %v1312 = vpop.f32.mrb[0].mxu0
        %v1313 = vadd.f32 0.0, %v1312
        %v1314 = vpop.f32.mrb[0].mxu0
        %v1315 = vadd.f32 0.0, %v1314
        %v1316 = vpop.f32.mrb[0].mxu0
        %v1317 = vadd.f32 0.0, %v1316
        %v1318 = vpop.f32.mrb[0].mxu0
        %v1319 = vadd.f32 0.0, %v1318
        %1320 = vdwg.mxu0
        %1321 = vmatprep.subr.bf16.mxu0 0
        %1322 = vmatpush1.bf16.msra.mxu0 %v1276
        %1323 = vmatprep.subr.bf16.mxu0 0
        %1324 = vmatpush1.bf16.msra.mxu0 0
        %1325 = vmatprep.subr.bf16.mxu0 0
        %1326 = vmatpush1.bf16.msra.mxu0 0
        %1327 = vmatprep.subr.bf16.mxu0 0
        %1328 = vmatpush1.bf16.msra.mxu0 0
        %1329 = vmatprep.subr.bf16.mxu0 0
        %1330 = vmatpush1.bf16.msra.mxu0 0
        %1331 = vmatprep.subr.bf16.mxu0 0
        %1332 = vmatpush1.bf16.msra.mxu0 0
        %1333 = vmatprep.subr.bf16.mxu0 0
        %1334 = vmatpush1.bf16.msra.mxu0 0
        %1335 = vmatprep.subr.bf16.mxu0 0
        %1336 = vmatpush1.bf16.msra.mxu0 0
        %1337 = vmatprep.subr.bf16.mxu0 0
        %1338 = vmatpush1.bf16.msra.mxu0 0
        %1339 = vmatprep.subr.bf16.mxu0 0
        %1340 = vmatpush1.bf16.msra.mxu0 0
        %1341 = vmatprep.subr.bf16.mxu0 0
        %1342 = vmatpush1.bf16.msra.mxu0 0
        %1343 = vmatprep.subr.bf16.mxu0 0
        %1344 = vmatpush1.bf16.msra.mxu0 0
        %1345 = vmatprep.subr.bf16.mxu0 0
        %1346 = vmatpush1.bf16.msra.mxu0 0
        %1347 = vmatprep.subr.bf16.mxu0 0
        %1348 = vmatpush1.bf16.msra.mxu0 0
        %1349 = vmatprep.subr.bf16.mxu0 0
        %1350 = vmatpush1.bf16.msra.mxu0 0
        %1351 = vmatprep.subr.bf16.mxu0 0
        %1352 = vmatpush1.bf16.msra.mxu0 0
        %1353 = vmatprep.mubr.bf16.mxu0 0
        %1354 = vmatmul.mubr.bf16.gmra.mrb[0].mxu0 %v1267
        %v1355 = vpop.f32.mrb[0].mxu0
        %v1356 = vadd.f32 0.0, %v1355
        %v1357 = vpop.f32.mrb[0].mxu0
        %v1358 = vpop.f32.mrb[0].mxu0
        %v1359 = vadd.f32 0.0, %v1358
        %v1360 = vpop.f32.mrb[0].mxu0
        %1361 = vdwg.mxu0
        %v1362 = vadd.f32 %v1240, %v1313
        %v1363 = vadd.f32 %v1241, %v1315
        %v1364 = vadd.f32 %v1242, %v1356
        %v1365 = vadd.f32 %v1243, %v1317
        %v1366 = vadd.f32 %v1244, %v1319
        %v1367 = vadd.f32 %v1245, %v1359
        %v1368 = vld [vmem:[%s1] sm:$0xff]
        %v1369 = vld [vmem:[%s1 + $0x8] sm:$0xff]
        %1371 = vset.pattern.permute.xlu0 0
        %1372 = vperm.xlu0 %1371, %v1368
        %v1373 = vpop.permute.xlu0 %1372
        %1376 = vset.pattern.permute.xlu0 0
        %1377 = vperm.xlu0 %1376, %v1369
        %v1378 = vpop.permute.xlu0 %1377
        %v1380 = vadd.f32 %v1362, %v1373
        %v1381 = vadd.f32 %v1363, %v1373
        %v1382 = vadd.f32 %v1364, %v1373
        %v1383 = vadd.f32 %v1365, %v1378
        %v1384 = vadd.f32 %v1366, %v1378
        %v1385 = vadd.f32 %v1367, %v1378
        %v1386 = vxor.u32 %v1383, 2147483648
        %v1387 = vxor.u32 %v1384, 2147483648
        %v1388 = vxor.u32 %v1385, 2147483648
        %v1389 = vmul.f32 %v1386, 1.442695
        %v1390 = vpow.pop %v1389
        %v1391 = vmul.f32 %v1387, 1.442695
        %v1392 = vpow.pop %v1391
        %v1393 = vmul.f32 %v1388, 1.442695
        %v1394 = vpow.pop %v1393
        %v1395 = vadd.f32 %v1390, 1.0
        %v1396 = vadd.f32 %v1392, 1.0
        %v1397 = vadd.f32 %v1394, 1.0
        %v1398 = vrcp.pop %v1395
        %v1399 = vmul.f32 1.0, %v1398
        %v1400 = vrcp.pop %v1396
        %v1401 = vmul.f32 1.0, %v1400
        %v1402 = vrcp.pop %v1397
        %v1403 = vmul.f32 1.0, %v1402
        %v1404 = vmul.f32 %v1380, %v1399
        %v1405 = vmul.f32 %v1381, %v1401
        %v1406 = vmul.f32 %v1382, %v1403
        %1407 = vst [vmem:[%s248] sm:$0xff] %v1404
        %1408 = vst [vmem:[%s248 + $0x8] sm:$0xff] %v1405
        %1409 = vst [vmem:[%s248 + $0x10] sm:$0xff] %v1406
        %s1410 = sand.u32 %s142, 1
        %s1411 = scalar_lea.sflag [#allocation3], %s1410
        %s1412 = sand.u32 %s142, 1
        %s1413 = smul.addr %s1412, 24
        %s1414 = scalar_lea.vmem [#allocation2], %s1413
        // Predicated region
        $region37: #{tpu_custom_call.1} parent=35 // pred_check
          %p1415 = pneg %p152
        $region38: #{tpu_custom_call.1} parent=35 // pred_check_branch
          %1417 = sbr.rel (%p1415) target = $region40
        $region39: #{tpu_custom_call.1} parent=35 // pred_region
          %s1418 = smul.u32 3, %s23
          %s1420 = ssub.s32 384, 384
          %1421 = vsyncadd %s1411, %s1420
          %s1422 = smul.addr %s22, 3
          %s1423 = sadd.s32 %s1418, %s1422
          %s1424 = smul.addr %s1423, 128
          %s1425 = scalar_lea.hbm %s4, %s1424
          %s1427 = sshll.u32 %s1414, 4
          %s1428 = int_to_ptr.vmem [resolvable:$true] %s1427
          %1430 = dma.vmem_to_hbm [thread:$0]  %s1428, 384, %s1425, %s1411
        $region40: #{tpu_custom_call.1} parent=35 // pred_fallthru
          _
      $region36: #{tpu_custom_call.1} parent=5 // pred_fallthru
        _
      %p1431 = scmp.le.s32.totalorder 2, %s13
      // Predicated region
      $region41: #{tpu_custom_call.1} parent=5 // pred_check
        %p1432 = pneg %p1431
      $region42: #{tpu_custom_call.1} parent=5 // pred_check_branch
        %1434 = sbr.rel (%p1432) target = $region44
      $region43: #{tpu_custom_call.1} parent=5 // pred_region
        %s1435 = ssub.s32 %s13, 2
        // Predicated region
        $region45: #{tpu_custom_call.1} parent=43 // pred_check
          %p1436 = pneg %p158
        $region46: #{tpu_custom_call.1} parent=43 // pred_check_branch
          %1438 = sbr.rel (%p1436) target = $region48
        $region47: #{tpu_custom_call.1} parent=43 // pred_region
          %s1439 = sand.u32 %s143, 1
          %s1440 = scalar_lea.sflag [#allocation3], %s1439
          %s1441 = sand.u32 %s143, 1
          %s1442 = smul.addr %s1441, 24
          %s1443 = scalar_lea.vmem [#allocation2], %s1442
          %1444 = dma.done %s1440, 384
        $region48: #{tpu_custom_call.1} parent=43 // pred_fallthru
          _
      $region44: #{tpu_custom_call.1} parent=5 // pred_fallthru
        _
    $region6: #{tpu_custom_call.1} parent=1 // loop_footer
      %s17 = sadd.s32 1, %s13
    $region7: #{tpu_custom_call.1} parent=1 // loop_footer_branch
      %12 = sbr.rel target = $region3
    $region8: #{tpu_custom_call.1} parent=1 // loop_exit
      _
    %1445 = vsyncpa [#allocation3], 1
    %s1446 = scalar_lea.sflag [#allocation3], 1
    %1447 = vsyncpa %s1446, 1

</llo_original>
